<compile_context>
chip_gen: v5e
topology: v5e:2x2
jax: 0.10.0
libtpu: 0.0.40
codegen_flags: <defaults>
</compile_context>

<pallas_src>
import functools

import jax
import jax.numpy as jnp
import numpy as np
from jax.experimental import pallas as pl
from jax.experimental.pallas import tpu as pltpu

LANE = 128     # output-channel padding granularity (vreg lane width / MXU tile)
KALIGN = 16    # bf16 K-dim (sublane packing) alignment


def _round_up(n, m):
    return (n + m - 1) // m * m


def _pick_row_tile(H, W, Cp):
    """Largest H-tile whose (TH*W x Cp) f32 working set is ~<= 0.5 MiB, with
    H % TH == 0 and TH*W sublane-aligned.  Falls back to a single tile."""
    budget_flat_rows = max(8, (512 * 1024) // (max(Cp, LANE) * 4))
    max_th = max(1, min(H, budget_flat_rows // max(W, 1)))
    for cand in range(max_th, 0, -1):
        if H % cand == 0 and (cand * W) % 8 == 0:
            return cand
    return H


# ---------------------------------------------------------------------------
# Kernel
# ---------------------------------------------------------------------------
def _block_kernel(x_ref, s1_ref, b1_ref, w1_ref, s2_ref, b2_ref,
                  wy_ref, wx_ref, w2_ref, *rest,
                  H, W, TH, stride, planes, identity):
    if identity:
        (o_ref,) = rest
        ws_ref = None
    else:
        ws_ref, o_ref = rest

    t = pl.program_id(1)
    tile_rows = TH * W                      # flat output positions in this tile
    win_rows = (TH + 2) * W                 # +1 halo row above and below
    start = t * tile_rows                   # flat offset into row-padded x
    start_h = pl.multiple_of(start, 8) if tile_rows % 8 == 0 else start

    # bn1 -> relu -> conv1(1x1) -> bn2 -> relu on the haloed window.
    xw_b = x_ref[pl.ds(start_h, win_rows), :]                 # (win_rows, Cin_k) bf16
    xw = xw_b.astype(jnp.float32)
    s = jnp.maximum(xw * s1_ref[...] + b1_ref[...], 0.0)
    h = jnp.dot(s.astype(w1_ref.dtype), w1_ref[...],
                preferred_element_type=jnp.float32)           # (win_rows, Cp)
    h = jnp.maximum(h * s2_ref[...] + b2_ref[...], 0.0)
    C = h.shape[-1]

    # In-kernel border masks (no staging scratch, no lane-sparse mask input).
    q = jax.lax.broadcasted_iota(jnp.int32, (tile_rows, 1), 0)
    up_ok = ((q + start) >= W).astype(jnp.float32)            # row-1 inside image
    dn_ok = ((q + start) < (H - 1) * W).astype(jnp.float32)   # row+1 inside image
    col = q % W
    ml = (col >= 1).astype(jnp.float32)                       # col-1 inside row
    mr = (col <= W - 2).astype(jnp.float32)                   # col+1 inside row

    # ActiveShiftLayer, separable bilinear taps with zero padding.
    # H-direction taps: value slices of the haloed window.
    g = (wy_ref[1:2, :] * h[W:W + tile_rows, :]
         + wy_ref[0:1, :] * (up_ok * h[0:tile_rows, :])
         + wy_ref[2:3, :] * (dn_ok * h[2 * W:2 * W + tile_rows, :]))

    # W-direction taps: +/-1 flat-row shifted values; the shifted-in rows land
    # only at ml/mr-masked border columns.
    zrow = jnp.zeros((1, C), g.dtype)
    gl = jnp.concatenate([zrow, g[:-1, :]], axis=0)           # value at pos - 1
    gr = jnp.concatenate([g[1:, :], zrow], axis=0)            # value at pos + 1
    a = (wx_ref[1:2, :] * g
         + wx_ref[0:1, :] * (ml * gl)
         + wx_ref[2:3, :] * (mr * gr))

    xs_b = xw_b[W:W + tile_rows, :]                           # tile's own x rows (bf16)
    if stride != 1:
        # TODO(synk): value-level strided select (only reached when stride > 1;
        # the wrapper forces a single H tile in that case).
        Ho_t, Wo = -(-TH // stride), -(-W // stride)
        a = a.reshape(TH, W, C)[::stride, ::stride, :].reshape(Ho_t * Wo, C)
        xs_b = xs_b.reshape(TH, W, xs_b.shape[-1])[::stride, ::stride, :]
        xs_b = xs_b.reshape(Ho_t * Wo, xs_b.shape[-1])

    out = jnp.dot(a.astype(w2_ref.dtype), w2_ref[...],
                  preferred_element_type=jnp.float32)         # (rows, Cp)
    if identity:
        out = out[:, :planes] + xs_b.astype(jnp.float32)[:, :planes]
    else:
        out = out + jnp.dot(xs_b, ws_ref[...],
                            preferred_element_type=jnp.float32)
        out = out[:, :planes]
    o_ref[...] = out.astype(o_ref.dtype)


# ---------------------------------------------------------------------------
# Parameter prep helpers
# ---------------------------------------------------------------------------
def _bn_scale_shift(gamma, beta, mean, var, eps=1e-5):
    scale = gamma / jnp.sqrt(var + eps)
    shift = beta - mean * scale
    return scale[None, :], shift[None, :]


def _bilinear_axis_taps(shift):
    """shift: (C, 2) with (dy, dx) in (-1, 1). Returns (wy, wx), each (3, C)."""
    offs = jnp.array([-1.0, 0.0, 1.0], jnp.float32)

    def axis_w(s):
        i = jnp.floor(s)
        f = s - i
        return ((offs[:, None] == i[None, :]) * (1.0 - f)[None, :]
                + (offs[:, None] == (i + 1.0)[None, :]) * f[None, :])  # (3, C)

    return axis_w(shift[:, 0]), axis_w(shift[:, 1])


# ---------------------------------------------------------------------------
# Forward (NHWC core + NCHW wrapper matching the PyTorch interface)
# ---------------------------------------------------------------------------
def basic_block_forward_nhwc(x, p, stride=1, row_tile=None):
    N, H, W, Cin = x.shape
    planes = p["w1"].shape[1]
    Cp = _round_up(planes, LANE)          # lane/MXU-dense compute width
    pc = Cp - planes
    identity = "ws" not in p              # nn.Sequential() shortcut
    if identity:
        assert Cin == planes and stride == 1
    Ho, Wo = -(-H // stride), -(-W // stride)

    Cin_k = _round_up(Cin, KALIGN)        # bf16 K-dim alignment for the MXU
    cpad = Cin_k - Cin

    if stride != 1:
        TH = H                            # single H tile for the strided blocks
    else:
        TH = row_tile if row_tile is not None else _pick_row_tile(H, W, Cp)
        assert H % TH == 0 and ((TH * W) % 8 == 0 or TH == H)
    nH = H // TH
    out_tile_rows = TH * W if stride == 1 else Ho * Wo

    # ---- parameter prep (tiny tensors, fused by XLA) ----
    s1, b1 = _bn_scale_shift(p["gamma1"], p["beta1"], p["mean1"], p["var1"])
    s2, b2 = _bn_scale_shift(p["gamma2"], p["beta2"], p["mean2"], p["var2"])
    s1 = jnp.pad(s1, ((0, 0), (0, cpad)))
    b1 = jnp.pad(b1, ((0, 0), (0, cpad)))
    s2 = jnp.pad(s2, ((0, 0), (0, pc)))
    b2 = jnp.pad(b2, ((0, 0), (0, pc)))
    wy, wx = _bilinear_axis_taps(p["shift"])
    wy = jnp.pad(wy, ((0, 0), (0, pc)))
    wx = jnp.pad(wx, ((0, 0), (0, pc)))
    w1 = jnp.pad(p["w1"], ((0, cpad), (0, pc))).astype(jnp.bfloat16)
    w2 = jnp.pad(p["w2"], ((0, pc), (0, pc))).astype(jnp.bfloat16)

    # x: bf16 DMA, channel pad to the K alignment, and one zero row above /
    # below the image so every H tile gets an in-bounds 1-row halo window.
    xk = jnp.pad(x.astype(jnp.bfloat16), ((0, 0), (1, 1), (0, 0), (0, cpad)))
    x2 = xk.reshape(N, (H + 2) * W, Cin_k)

    const2 = lambda n, t: (0, 0)
    in_specs = [
        pl.BlockSpec((None, (H + 2) * W, Cin_k), lambda n, t: (n, 0, 0)),
        pl.BlockSpec((1, Cin_k), const2),
        pl.BlockSpec((1, Cin_k), const2),
        pl.BlockSpec((Cin_k, Cp), const2),
        pl.BlockSpec((1, Cp), const2),
        pl.BlockSpec((1, Cp), const2),
        pl.BlockSpec((3, Cp), const2),
        pl.BlockSpec((3, Cp), const2),
        pl.BlockSpec((Cp, Cp), const2),
    ]
    args = [x2, s1, b1, w1, s2, b2, wy, wx, w2]
    if not identity:
        ws = jnp.pad(p["ws"], ((0, cpad), (0, pc))).astype(jnp.bfloat16)
        in_specs.append(pl.BlockSpec((Cin_k, Cp), const2))
        args.append(ws)

    kern = functools.partial(_block_kernel, H=H, W=W, TH=TH, stride=stride,
                             planes=planes, identity=identity)
    out = pl.pallas_call(
        kern,
        out_shape=jax.ShapeDtypeStruct((N, Ho * Wo, planes), jnp.float32),
        grid=(N, nH),
        in_specs=in_specs,
        out_specs=pl.BlockSpec((None, out_tile_rows, planes),
                               lambda n, t: (n, t, 0)),
        compiler_params=pltpu.CompilerParams(
            dimension_semantics=("parallel", "parallel")),
    )(*args)
    return out.reshape(N, Ho, Wo, planes)


@functools.partial(jax.jit, static_argnames=("stride", "row_tile"))
def basic_block_forward(x_nchw, p, stride=1, row_tile=None):
    """NCHW wrapper matching the PyTorch interface.  (Whole networks should
    stay NHWC and call basic_block_forward_nhwc directly.)"""
    x = jnp.transpose(x_nchw, (0, 2, 3, 1))
    out = basic_block_forward_nhwc(x, p, stride=stride, row_tile=row_tile)
    return jnp.transpose(out, (0, 3, 1, 2))


# ---------------------------------------------------------------------------
# Pure-JAX reference (eval-mode BN; bf16 x / matmul operands like the kernel)
# ---------------------------------------------------------------------------
def _dot_bf16(a, w):
    return jnp.dot(a.astype(jnp.bfloat16), w.astype(jnp.bfloat16),
                   preferred_element_type=jnp.float32)


def reference_forward(x_nchw, p, stride=1):
    x = jnp.transpose(x_nchw, (0, 2, 3, 1))
    x = x.astype(jnp.bfloat16).astype(jnp.float32)   # match kernel's bf16 DMA
    N, H, W, _ = x.shape
    s1, b1 = _bn_scale_shift(p["gamma1"], p["beta1"], p["mean1"], p["var1"])
    s2, b2 = _bn_scale_shift(p["gamma2"], p["beta2"], p["mean2"], p["var2"])
    h = _dot_bf16(jnp.maximum(x * s1 + b1, 0.0), p["w1"])
    h = jnp.maximum(h * s2 + b2, 0.0)
    wy, wx = _bilinear_axis_taps(p["shift"])
    taps = wy[:, None, :] * wx[None, :, :]                 # (3, 3, planes)
    hp = jnp.pad(h, ((0, 0), (1, 1), (1, 1), (0, 0)))
    a = sum(taps[ky, kx] * hp[:, ky:ky + H, kx:kx + W, :]
            for ky in range(3) for kx in range(3))
    a_s = a[:, ::stride, ::stride, :]
    x_s = x[:, ::stride, ::stride, :]
    out = _dot_bf16(a_s, p["w2"])
    out = out + (_dot_bf16(x_s, p["ws"]) if "ws" in p else x_s)
    return jnp.transpose(out, (0, 3, 1, 2))


def init_params(key, in_planes, planes, stride):
    ks = jax.random.split(key, 12)
    nrm = jax.random.normal
    p = {
        "gamma1": 1.0 + 0.1 * nrm(ks[0], (in_planes,), jnp.float32),
        "beta1": 0.1 * nrm(ks[1], (in_planes,), jnp.float32),
        "mean1": 0.1 * nrm(ks[2], (in_planes,), jnp.float32),
        "var1": jax.random.uniform(ks[3], (in_planes,), jnp.float32, 0.5, 1.5),
        "w1": 0.2 * nrm(ks[4], (in_planes, planes), jnp.float32),
        "gamma2": 1.0 + 0.1 * nrm(ks[5], (planes,), jnp.float32),
        "beta2": 0.1 * nrm(ks[6], (planes,), jnp.float32),
        "mean2": 0.1 * nrm(ks[7], (planes,), jnp.float32),
        "var2": jax.random.uniform(ks[8], (planes,), jnp.float32, 0.5, 1.5),
        "shift": jax.random.uniform(ks[9], (planes, 2), jnp.float32, -0.9, 0.9),
        "w2": 0.2 * nrm(ks[10], (planes, planes), jnp.float32),
    }
    if stride != 1 or in_planes != planes:
        p["ws"] = 0.2 * nrm(ks[11], (in_planes, planes), jnp.float32)
    return p


if __name__ == "__main__":
    N, H, W = 2, 16, 16
    cases = [
        # projection (1x1 conv) shortcut, 2 H tiles (exercises the halo masks)
        dict(in_planes=4, planes=8, stride=1, row_tile=8),
        # identity shortcut fast path, 4 H tiles
        dict(in_planes=8, planes=8, stride=1, row_tile=4),
        # projection shortcut, auto tile size (single tile)
        dict(in_planes=4, planes=8, stride=1, row_tile=None),
    ]
    key = jax.random.PRNGKey(0)
    for cfg in cases:
        key, kx, kp = jax.random.split(key, 3)
        x = jax.random.normal(kx, (N, cfg["in_planes"], H, W), jnp.float32)
        params = init_params(kp, cfg["in_planes"], cfg["planes"], cfg["stride"])

        out = jax.block_until_ready(
            basic_block_forward(x, params, stride=cfg["stride"],
                                row_tile=cfg["row_tile"]))
        ref = jax.block_until_ready(
            reference_forward(x, params, stride=cfg["stride"]))

        Ho = -(-H // cfg["stride"])
        Wo = -(-W // cfg["stride"])
        assert out.shape == (N, cfg["planes"], Ho, Wo)
        np.testing.assert_allclose(np.asarray(out), np.asarray(ref),
                                   rtol=5e-3, atol=5e-3)
    print("KERNEL_OK")
</pallas_src>

<mosaic_0001>
module attributes {stable_mosaic.version = 11 : i64} {
  func.func @_block_kernel(%arg0: i32, %arg1: i32, %arg2: memref<1x288x16xbf16, #tpu.memory_space<vmem>>, %arg3: memref<1x16xf32, #tpu.memory_space<vmem>>, %arg4: memref<1x16xf32, #tpu.memory_space<vmem>>, %arg5: memref<16x128xbf16, #tpu.memory_space<vmem>>, %arg6: memref<1x128xf32, #tpu.memory_space<vmem>>, %arg7: memref<1x128xf32, #tpu.memory_space<vmem>>, %arg8: memref<3x128xf32, #tpu.memory_space<vmem>>, %arg9: memref<3x128xf32, #tpu.memory_space<vmem>>, %arg10: memref<128x128xbf16, #tpu.memory_space<vmem>>, %arg11: memref<16x128xbf16, #tpu.memory_space<vmem>>, %arg12: memref<1x128x8xf32, #tpu.memory_space<vmem>>) attributes {dimension_semantics = [#tpu.dimension_semantics<parallel>, #tpu.dimension_semantics<parallel>], iteration_bounds = array<i64: 2, 2>, scalar_prefetch = 0 : i64, scratch_operands = 0 : i64, tpu.core_type = #tpu.core_type<tc>, window_params = [{transform_indices = @transform_0, window_bounds = array<i64: 1, 288, 16>}, {pipeline_mode = #tpu.pipeline_mode<synchronous>, transform_indices = @transform_1, window_bounds = array<i64: 1, 16>}, {pipeline_mode = #tpu.pipeline_mode<synchronous>, transform_indices = @transform_2, window_bounds = array<i64: 1, 16>}, {pipeline_mode = #tpu.pipeline_mode<synchronous>, transform_indices = @transform_3, window_bounds = array<i64: 16, 128>}, {pipeline_mode = #tpu.pipeline_mode<synchronous>, transform_indices = @transform_4, window_bounds = array<i64: 1, 128>}, {pipeline_mode = #tpu.pipeline_mode<synchronous>, transform_indices = @transform_5, window_bounds = array<i64: 1, 128>}, {pipeline_mode = #tpu.pipeline_mode<synchronous>, transform_indices = @transform_6, window_bounds = array<i64: 3, 128>}, {pipeline_mode = #tpu.pipeline_mode<synchronous>, transform_indices = @transform_7, window_bounds = array<i64: 3, 128>}, {pipeline_mode = #tpu.pipeline_mode<synchronous>, transform_indices = @transform_8, window_bounds = array<i64: 128, 128>}, {pipeline_mode = #tpu.pipeline_mode<synchronous>, transform_indices = @transform_9, window_bounds = array<i64: 16, 128>}, {transform_indices = @transform_10, window_bounds = array<i64: 1, 128, 8>}]} {
    %c128_i32 = arith.constant 128 : i32
    %0 = arith.muli %arg1, %c128_i32 : i32
    %1 = tpu.assume_multiple %0, 8 : i32
    %c0 = arith.constant 0 : index
    %2 = arith.index_cast %1 : i32 to index
    %c0_0 = arith.constant 0 : index
    %3 = vector.load %arg2[%c0, %2, %c0_0] : memref<1x288x16xbf16, #tpu.memory_space<vmem>>, vector<1x160x16xbf16>
    %4 = vector.shape_cast %3 : vector<1x160x16xbf16> to vector<160x16xbf16>
    %5 = arith.extf %4 : vector<160x16xbf16> to vector<160x16xf32>
    %c0_1 = arith.constant 0 : index
    %c0_2 = arith.constant 0 : index
    %6 = vector.load %arg3[%c0_1, %c0_2] : memref<1x16xf32, #tpu.memory_space<vmem>>, vector<1x16xf32>
    %7 = vector.broadcast %6 : vector<1x16xf32> to vector<160x16xf32>
    %8 = arith.mulf %5, %7 : vector<160x16xf32>
    %c0_3 = arith.constant 0 : index
    %c0_4 = arith.constant 0 : index
    %9 = vector.load %arg4[%c0_3, %c0_4] : memref<1x16xf32, #tpu.memory_space<vmem>>, vector<1x16xf32>
    %10 = vector.broadcast %9 : vector<1x16xf32> to vector<160x16xf32>
    %11 = arith.addf %8, %10 : vector<160x16xf32>
    %cst = arith.constant 0.000000e+00 : f32
    %12 = vector.broadcast %cst : f32 to vector<160x16xf32>
    %13 = arith.maximumf %11, %12 : vector<160x16xf32>
    %14 = arith.truncf %13 : vector<160x16xf32> to vector<160x16xbf16>
    %c0_5 = arith.constant 0 : index
    %c0_6 = arith.constant 0 : index
    %15 = vector.load %arg5[%c0_5, %c0_6] : memref<16x128xbf16, #tpu.memory_space<vmem>>, vector<16x128xbf16>
    %cst_7 = arith.constant dense<0.000000e+00> : vector<160x128xf32>
    %16 = tpu.matmul %14, %15, %cst_7 {dimension_numbers = #tpu.dot_dimension_numbers<[1], [0], [0], [1], [0, 0, 1, 1], [], []>} : vector<160x16xbf16>, vector<16x128xbf16>, vector<160x128xf32> -> vector<160x128xf32>
    %c0_8 = arith.constant 0 : index
    %c0_9 = arith.constant 0 : index
    %17 = vector.load %arg6[%c0_8, %c0_9] : memref<1x128xf32, #tpu.memory_space<vmem>>, vector<1x128xf32>
    %18 = vector.broadcast %17 : vector<1x128xf32> to vector<160x128xf32>
    %19 = arith.mulf %16, %18 : vector<160x128xf32>
    %c0_10 = arith.constant 0 : index
    %c0_11 = arith.constant 0 : index
    %20 = vector.load %arg7[%c0_10, %c0_11] : memref<1x128xf32, #tpu.memory_space<vmem>>, vector<1x128xf32>
    %21 = vector.broadcast %20 : vector<1x128xf32> to vector<160x128xf32>
    %22 = arith.addf %19, %21 : vector<160x128xf32>
    %cst_12 = arith.constant 0.000000e+00 : f32
    %23 = vector.broadcast %cst_12 : f32 to vector<160x128xf32>
    %24 = arith.maximumf %22, %23 : vector<160x128xf32>
    %25 = tpu.iota {dimensions = array<i32: 0>} : vector<128x1xi32>
    %26 = vector.broadcast %0 : i32 to vector<128x1xi32>
    %27 = arith.addi %25, %26 : vector<128x1xi32>
    %c16_i32 = arith.constant 16 : i32
    %28 = vector.broadcast %c16_i32 : i32 to vector<128x1xi32>
    %29 = arith.cmpi sge, %27, %28 : vector<128x1xi32>
    %30 = arith.extui %29 : vector<128x1xi1> to vector<128x1xi32>
    %31 = arith.sitofp %30 : vector<128x1xi32> to vector<128x1xf32>
    %32 = vector.broadcast %0 : i32 to vector<128x1xi32>
    %33 = arith.addi %25, %32 : vector<128x1xi32>
    %c240_i32 = arith.constant 240 : i32
    %34 = vector.broadcast %c240_i32 : i32 to vector<128x1xi32>
    %35 = arith.cmpi slt, %33, %34 : vector<128x1xi32>
    %36 = arith.extui %35 : vector<128x1xi1> to vector<128x1xi32>
    %37 = arith.sitofp %36 : vector<128x1xi32> to vector<128x1xf32>
    %c16_i32_13 = arith.constant 16 : i32
    %c0_i32 = arith.constant 0 : i32
    %38 = arith.cmpi eq, %c16_i32_13, %c0_i32 : i32
    %c1_i32 = arith.constant 1 : i32
    %39 = arith.select %38, %c1_i32, %c16_i32_13 : i32
    %40 = vector.broadcast %39 : i32 to vector<128x1xi32>
    %41 = arith.remsi %25, %40 : vector<128x1xi32>
    %c0_i32_14 = arith.constant 0 : i32
    %42 = vector.broadcast %c0_i32_14 : i32 to vector<128x1xi32>
    %43 = arith.cmpi ne, %41, %42 : vector<128x1xi32>
    %c0_i32_15 = arith.constant 0 : i32
    %44 = vector.broadcast %c0_i32_15 : i32 to vector<128x1xi32>
    %45 = arith.cmpi slt, %41, %44 : vector<128x1xi32>
    %c0_i32_16 = arith.constant 0 : i32
    %46 = arith.cmpi slt, %39, %c0_i32_16 : i32
    %47 = vector.broadcast %46 : i1 to vector<128x1xi1>
    %48 = vector.broadcast %47 : vector<128x1xi1> to vector<128x1xi1>
    %49 = arith.xori %45, %48 : vector<128x1xi1>
    %50 = arith.andi %49, %43 : vector<128x1xi1>
    %51 = vector.broadcast %39 : i32 to vector<128x1xi32>
    %52 = arith.addi %41, %51 : vector<128x1xi32>
    %53 = arith.select %50, %52, %41 : vector<128x1xi1>, vector<128x1xi32>
    %c1_i32_17 = arith.constant 1 : i32
    %54 = vector.broadcast %c1_i32_17 : i32 to vector<128x1xi32>
    %55 = arith.cmpi sge, %53, %54 : vector<128x1xi32>
    %56 = arith.extui %55 : vector<128x1xi1> to vector<128x1xi32>
    %57 = arith.sitofp %56 : vector<128x1xi32> to vector<128x1xf32>
    %c14_i32 = arith.constant 14 : i32
    %58 = vector.broadcast %c14_i32 : i32 to vector<128x1xi32>
    %59 = arith.cmpi sle, %53, %58 : vector<128x1xi32>
    %60 = arith.extui %59 : vector<128x1xi1> to vector<128x1xi32>
    %61 = arith.sitofp %60 : vector<128x1xi32> to vector<128x1xf32>
    %c1 = arith.constant 1 : index
    %c0_18 = arith.constant 0 : index
    %62 = vector.load %arg8[%c1, %c0_18] : memref<3x128xf32, #tpu.memory_space<vmem>>, vector<1x128xf32>
    %63 = vector.extract_strided_slice %24 {offsets = [16, 0], sizes = [128, 128], strides = [1, 1]} : vector<160x128xf32> to vector<128x128xf32>
    %64 = vector.broadcast %62 : vector<1x128xf32> to vector<128x128xf32>
    %65 = arith.mulf %64, %63 : vector<128x128xf32>
    %c0_19 = arith.constant 0 : index
    %c0_20 = arith.constant 0 : index
    %66 = vector.load %arg8[%c0_19, %c0_20] : memref<3x128xf32, #tpu.memory_space<vmem>>, vector<1x128xf32>
    %67 = vector.extract_strided_slice %24 {offsets = [0, 0], sizes = [128, 128], strides = [1, 1]} : vector<160x128xf32> to vector<128x128xf32>
    %68 = vector.broadcast %31 : vector<128x1xf32> to vector<128x128xf32>
    %69 = arith.mulf %68, %67 : vector<128x128xf32>
    %70 = vector.broadcast %66 : vector<1x128xf32> to vector<128x128xf32>
    %71 = arith.mulf %70, %69 : vector<128x128xf32>
    %72 = arith.addf %65, %71 : vector<128x128xf32>
    %c2 = arith.constant 2 : index
    %c0_21 = arith.constant 0 : index
    %73 = vector.load %arg8[%c2, %c0_21] : memref<3x128xf32, #tpu.memory_space<vmem>>, vector<1x128xf32>
    %74 = vector.extract_strided_slice %24 {offsets = [32, 0], sizes = [128, 128], strides = [1, 1]} : vector<160x128xf32> to vector<128x128xf32>
    %75 = vector.broadcast %37 : vector<128x1xf32> to vector<128x128xf32>
    %76 = arith.mulf %75, %74 : vector<128x128xf32>
    %77 = vector.broadcast %73 : vector<1x128xf32> to vector<128x128xf32>
    %78 = arith.mulf %77, %76 : vector<128x128xf32>
    %79 = arith.addf %72, %78 : vector<128x128xf32>
    %cst_22 = arith.constant 0.000000e+00 : f32
    %80 = vector.broadcast %cst_22 : f32 to vector<1x128xf32>
    %81 = vector.extract_strided_slice %79 {offsets = [0, 0], sizes = [127, 128], strides = [1, 1]} : vector<128x128xf32> to vector<127x128xf32>
    %82 = tpu.concatenate %80, %81 in 0 : vector<1x128xf32>, vector<127x128xf32> -> vector<128x128xf32>
    %83 = vector.extract_strided_slice %79 {offsets = [1, 0], sizes = [127, 128], strides = [1, 1]} : vector<128x128xf32> to vector<127x128xf32>
    %84 = tpu.concatenate %83, %80 in 0 : vector<127x128xf32>, vector<1x128xf32> -> vector<128x128xf32>
    %c1_23 = arith.constant 1 : index
    %c0_24 = arith.constant 0 : index
    %85 = vector.load %arg9[%c1_23, %c0_24] : memref<3x128xf32, #tpu.memory_space<vmem>>, vector<1x128xf32>
    %86 = vector.broadcast %85 : vector<1x128xf32> to vector<128x128xf32>
    %87 = arith.mulf %86, %79 : vector<128x128xf32>
    %c0_25 = arith.constant 0 : index
    %c0_26 = arith.constant 0 : index
    %88 = vector.load %arg9[%c0_25, %c0_26] : memref<3x128xf32, #tpu.memory_space<vmem>>, vector<1x128xf32>
    %89 = vector.broadcast %57 : vector<128x1xf32> to vector<128x128xf32>
    %90 = arith.mulf %89, %82 : vector<128x128xf32>
    %91 = vector.broadcast %88 : vector<1x128xf32> to vector<128x128xf32>
    %92 = arith.mulf %91, %90 : vector<128x128xf32>
    %93 = arith.addf %87, %92 : vector<128x128xf32>
    %c2_27 = arith.constant 2 : index
    %c0_28 = arith.constant 0 : index
    %94 = vector.load %arg9[%c2_27, %c0_28] : memref<3x128xf32, #tpu.memory_space<vmem>>, vector<1x128xf32>
    %95 = vector.broadcast %61 : vector<128x1xf32> to vector<128x128xf32>
    %96 = arith.mulf %95, %84 : vector<128x128xf32>
    %97 = vector.broadcast %94 : vector<1x128xf32> to vector<128x128xf32>
    %98 = arith.mulf %97, %96 : vector<128x128xf32>
    %99 = arith.addf %93, %98 : vector<128x128xf32>
    %100 = vector.extract_strided_slice %4 {offsets = [16, 0], sizes = [128, 16], strides = [1, 1]} : vector<160x16xbf16> to vector<128x16xbf16>
    %101 = arith.truncf %99 : vector<128x128xf32> to vector<128x128xbf16>
    %c0_29 = arith.constant 0 : index
    %c0_30 = arith.constant 0 : index
    %102 = vector.load %arg10[%c0_29, %c0_30] : memref<128x128xbf16, #tpu.memory_space<vmem>>, vector<128x128xbf16>
    %cst_31 = arith.constant dense<0.000000e+00> : vector<128x128xf32>
    %103 = tpu.matmul %101, %102, %cst_31 {dimension_numbers = #tpu.dot_dimension_numbers<[1], [0], [0], [1], [0, 0, 1, 1], [], []>} : vector<128x128xbf16>, vector<128x128xbf16>, vector<128x128xf32> -> vector<128x128xf32>
    %c0_32 = arith.constant 0 : index
    %c0_33 = arith.constant 0 : index
    %104 = vector.load %arg11[%c0_32, %c0_33] : memref<16x128xbf16, #tpu.memory_space<vmem>>, vector<16x128xbf16>
    %cst_34 = arith.constant dense<0.000000e+00> : vector<128x128xf32>
    %105 = tpu.matmul %100, %104, %cst_34 {dimension_numbers = #tpu.dot_dimension_numbers<[1], [0], [0], [1], [0, 0, 1, 1], [], []>} : vector<128x16xbf16>, vector<16x128xbf16>, vector<128x128xf32> -> vector<128x128xf32>
    %106 = arith.addf %103, %105 : vector<128x128xf32>
    %107 = vector.extract_strided_slice %106 {offsets = [0, 0], sizes = [128, 8], strides = [1, 1]} : vector<128x128xf32> to vector<128x8xf32>
    %c0_35 = arith.constant 0 : index
    %c0_36 = arith.constant 0 : index
    %c0_37 = arith.constant 0 : index
    %108 = vector.load %arg12[%c0_35, %c0_36, %c0_37] : memref<1x128x8xf32, #tpu.memory_space<vmem>>, vector<1x128x8xf32>
    %109 = vector.shape_cast %108 : vector<1x128x8xf32> to vector<128x8xf32>
    %110 = vector.shape_cast %107 : vector<128x8xf32> to vector<1x128x8xf32>
    tpu.vector_store %arg12[%c0_35, %c0_36, %c0_37], %110 {strides = array<i32>} : memref<1x128x8xf32, #tpu.memory_space<vmem>>, vector<1x128x8xf32>,
    return
  }
  func.func @transform_0(%arg0: i32, %arg1: i32) -> (i32, i32, i32) {
    %c0_i32 = arith.constant 0 : i32
    %c0_i32_0 = arith.constant 0 : i32
    %c0_i32_1 = arith.constant 0 : i32
    return %arg0, %c0_i32, %c0_i32_0 : i32, i32, i32
  }
  func.func @transform_1(%arg0: i32, %arg1: i32) -> (i32, i32) {
    %c0_i32 = arith.constant 0 : i32
    %c0_i32_0 = arith.constant 0 : i32
    %c0_i32_1 = arith.constant 0 : i32
    return %c0_i32, %c0_i32_0 : i32, i32
  }
  func.func @transform_2(%arg0: i32, %arg1: i32) -> (i32, i32) {
    %c0_i32 = arith.constant 0 : i32
    %c0_i32_0 = arith.constant 0 : i32
    %c0_i32_1 = arith.constant 0 : i32
    return %c0_i32, %c0_i32_0 : i32, i32
  }
  func.func @transform_3(%arg0: i32, %arg1: i32) -> (i32, i32) {
    %c0_i32 = arith.constant 0 : i32
    %c0_i32_0 = arith.constant 0 : i32
    %c0_i32_1 = arith.constant 0 : i32
    return %c0_i32, %c0_i32_0 : i32, i32
  }
  func.func @transform_4(%arg0: i32, %arg1: i32) -> (i32, i32) {
    %c0_i32 = arith.constant 0 : i32
    %c0_i32_0 = arith.constant 0 : i32
    %c0_i32_1 = arith.constant 0 : i32
    return %c0_i32, %c0_i32_0 : i32, i32
  }
  func.func @transform_5(%arg0: i32, %arg1: i32) -> (i32, i32) {
    %c0_i32 = arith.constant 0 : i32
    %c0_i32_0 = arith.constant 0 : i32
    %c0_i32_1 = arith.constant 0 : i32
    return %c0_i32, %c0_i32_0 : i32, i32
  }
  func.func @transform_6(%arg0: i32, %arg1: i32) -> (i32, i32) {
    %c0_i32 = arith.constant 0 : i32
    %c0_i32_0 = arith.constant 0 : i32
    %c0_i32_1 = arith.constant 0 : i32
    return %c0_i32, %c0_i32_0 : i32, i32
  }
  func.func @transform_7(%arg0: i32, %arg1: i32) -> (i32, i32) {
    %c0_i32 = arith.constant 0 : i32
    %c0_i32_0 = arith.constant 0 : i32
    %c0_i32_1 = arith.constant 0 : i32
    return %c0_i32, %c0_i32_0 : i32, i32
  }
  func.func @transform_8(%arg0: i32, %arg1: i32) -> (i32, i32) {
    %c0_i32 = arith.constant 0 : i32
    %c0_i32_0 = arith.constant 0 : i32
    %c0_i32_1 = arith.constant 0 : i32
    return %c0_i32, %c0_i32_0 : i32, i32
  }
  func.func @transform_9(%arg0: i32, %arg1: i32) -> (i32, i32) {
    %c0_i32 = arith.constant 0 : i32
    %c0_i32_0 = arith.constant 0 : i32
    %c0_i32_1 = arith.constant 0 : i32
    return %c0_i32, %c0_i32_0 : i32, i32
  }
  func.func @transform_10(%arg0: i32, %arg1: i32) -> (i32, i32, i32) {
    %c0_i32 = arith.constant 0 : i32
    %c0_i32_0 = arith.constant 0 : i32
    return %arg0, %arg1, %c0_i32 : i32, i32, i32
  }
}

</mosaic_0001>

<llo_original>
// kernel: basic_block_forward.1
$region0: #{basic_block_forward.1}
  #allocation0 [shape = 'u32[]', space=smem, size = 0x4, offset = 0x4, fixed_abs, tag = 'smem constant byte address 0x4 - core index']
  #allocation1 [shape = 'u32[72,128]{1,0:T(1,128)}', space=vmem, size = 0x9000, scoped, tag = 'internal scratch']
  %s0 = inlined_call_operand.vmem [shape: bf16[2,288,16], index: 0, kind: input, shape index: {}]
  %s1 = inlined_call_operand.vmem [shape: f32[1,16], index: 1, kind: input, shape index: {}]
  %s2 = inlined_call_operand.vmem [shape: f32[1,16], index: 2, kind: input, shape index: {}]
  %s3 = inlined_call_operand.vmem [shape: bf16[16,128], index: 3, kind: input, shape index: {}]
  %s4 = inlined_call_operand.vmem [shape: f32[1,128], index: 4, kind: input, shape index: {}]
  %s5 = inlined_call_operand.vmem [shape: f32[1,128], index: 5, kind: input, shape index: {}]
  %s6 = inlined_call_operand.vmem [shape: f32[3,128], index: 6, kind: input, shape index: {}]
  %s7 = inlined_call_operand.vmem [shape: f32[3,128], index: 7, kind: input, shape index: {}]
  %s8 = inlined_call_operand.vmem [shape: bf16[128,128], index: 8, kind: input, shape index: {}]
  %s9 = inlined_call_operand.vmem [shape: bf16[16,128], index: 9, kind: input, shape index: {}]
  %s10 = inlined_call_operand.vmem [shape: f32[2,256,8], index: 10, kind: output, shape index: {}]
  %s11 = sld [smem:[#allocation0]]
  $region73: #{basic_block_forward.1} parent=0
    _
  %s13 = ssub.s32 1, %s11
  %s14 = scalar_select 0, %s13, %s11
  loop: start=0, step=1, limit=6
  $region2: #{basic_block_forward.1} parent=0 // loop_pre_header
    _
  $region3: #{basic_block_forward.1} parent=0 // loop_header
    %s16 = sphi 0, %s20
    %p17 = scmp.ge.s32.totalorder %s16, 6
    %s23 = sphi 0, %s35
    %s24 = sphi 0, %s31
    %s25 = sphi 0, %s23
    %s26 = sphi 0, %s24
    %s27 = sphi 0, %s25
    %s28 = sphi 0, %s26
    %s38 = sphi 0, %s40
    %s41 = sphi 0, %s38
    %s42 = sphi 0, %s41
    %s58 = sphi 0, %s42
    %s62 = sphi 0, %s62
    %s64 = sphi 0, %s62
    %s65 = sphi 0, %s64
    %s79 = sphi 0, %s65
    %s83 = sphi 0, %s83
    %s85 = sphi 0, %s83
    %s86 = sphi 0, %s85
    %s100 = sphi 0, %s86
    %s104 = sphi 0, %s104
    %s106 = sphi 0, %s104
    %s107 = sphi 0, %s106
    %s121 = sphi 0, %s107
    %s125 = sphi 0, %s125
    %s127 = sphi 0, %s125
    %s128 = sphi 0, %s127
    %s142 = sphi 0, %s128
    %s146 = sphi 0, %s146
    %s148 = sphi 0, %s146
    %s149 = sphi 0, %s148
    %s163 = sphi 0, %s149
    %s167 = sphi 0, %s167
    %s169 = sphi 0, %s167
    %s170 = sphi 0, %s169
    %s184 = sphi 0, %s170
    %s188 = sphi 0, %s188
    %s190 = sphi 0, %s188
    %s191 = sphi 0, %s190
    %s205 = sphi 0, %s191
    %s209 = sphi 0, %s209
    %s211 = sphi 0, %s209
    %s212 = sphi 0, %s211
    %s226 = sphi 0, %s212
    %s230 = sphi 0, %s230
    %s232 = sphi 0, %s230
    %s233 = sphi 0, %s232
    %s247 = sphi 0, %s233
    %s255 = sphi 0, %s257
    %s258 = sphi 0, %s255
    %s259 = sphi 0, %s258
    %s275 = sphi 0, %s259
  $region4: #{basic_block_forward.1} parent=0 // loop_header_branch
    %19 = sbr.rel (%p17) target = $region8
  $region5: #{basic_block_forward.1} parent=0 // loop_body
    %s21 = ssub.s32 %s16, 1
    %s22 = ssub.s32 %s16, 2
    %s29 = sadd.s32 1, %s24
    %p30 = scmp.ge.s32.totalorder %s29, 2
    %s31 = scalar_select %p30, 0, %s29
    %s32 = sadd.s32 1, %s23
    %s33 = scalar_select %p30, %s32, %s23
    %p34 = scmp.ge.s32.totalorder %s33, 2
    %s35 = scalar_select %p34, 0, %s33
    %s36 = ssub.s32 %s23, %s35
    %p37 = scmp.eq.s32.totalorder %s36, 0
    %s39 = sadd.s32 %s38, 1
    %s40 = scalar_select %p37, %s38, %s39
    %p43 = pneg %p37
    %p44 = scmp.eq.s32.totalorder %s16, 3
    %p45 = por %p43, %p44
    %p46 = scmp.ne.s32.totalorder %s38, %s41
    %p47 = scmp.eq.s32.totalorder %s16, 0
    %p48 = por %p46, %p47
    %p49 = scmp.ne.s32.totalorder %s38, %s41
    %p50 = scmp.eq.s32.totalorder %s21, 3
    %p51 = por %p49, %p50
    %p52 = scmp.ne.s32.totalorder %s41, %s42
    %p53 = scmp.eq.s32.totalorder %s21, 0
    %p54 = por %p52, %p53
    %p55 = scmp.ne.s32.totalorder %s41, %s42
    %p56 = scmp.eq.s32.totalorder %s22, 3
    %p57 = por %p55, %p56
    %p59 = scmp.ne.s32.totalorder %s42, %s58
    %p60 = scmp.eq.s32.totalorder %s22, 0
    %p61 = por %p59, %p60
    %s63 = sadd.s32 %s62, 1
    %p66 = scmp.eq.s32.totalorder %s16, 3
    %p67 = scmp.ne.s32.totalorder %s62, %s64
    %p68 = scmp.eq.s32.totalorder %s16, 0
    %p69 = por %p67, %p68
    %p70 = scmp.ne.s32.totalorder %s62, %s64
    %p71 = scmp.eq.s32.totalorder %s21, 3
    %p72 = por %p70, %p71
    %p73 = scmp.ne.s32.totalorder %s64, %s65
    %p74 = scmp.eq.s32.totalorder %s21, 0
    %p75 = por %p73, %p74
    %p76 = scmp.ne.s32.totalorder %s64, %s65
    %p77 = scmp.eq.s32.totalorder %s22, 3
    %p78 = por %p76, %p77
    %p80 = scmp.ne.s32.totalorder %s65, %s79
    %p81 = scmp.eq.s32.totalorder %s22, 0
    %p82 = por %p80, %p81
    %s84 = sadd.s32 %s83, 1
    %p87 = scmp.eq.s32.totalorder %s16, 3
    %p88 = scmp.ne.s32.totalorder %s83, %s85
    %p89 = scmp.eq.s32.totalorder %s16, 0
    %p90 = por %p88, %p89
    %p91 = scmp.ne.s32.totalorder %s83, %s85
    %p92 = scmp.eq.s32.totalorder %s21, 3
    %p93 = por %p91, %p92
    %p94 = scmp.ne.s32.totalorder %s85, %s86
    %p95 = scmp.eq.s32.totalorder %s21, 0
    %p96 = por %p94, %p95
    %p97 = scmp.ne.s32.totalorder %s85, %s86
    %p98 = scmp.eq.s32.totalorder %s22, 3
    %p99 = por %p97, %p98
    %p101 = scmp.ne.s32.totalorder %s86, %s100
    %p102 = scmp.eq.s32.totalorder %s22, 0
    %p103 = por %p101, %p102
    %s105 = sadd.s32 %s104, 1
    %p108 = scmp.eq.s32.totalorder %s16, 3
    %p109 = scmp.ne.s32.totalorder %s104, %s106
    %p110 = scmp.eq.s32.totalorder %s16, 0
    %p111 = por %p109, %p110
    %p112 = scmp.ne.s32.totalorder %s104, %s106
    %p113 = scmp.eq.s32.totalorder %s21, 3
    %p114 = por %p112, %p113
    %p115 = scmp.ne.s32.totalorder %s106, %s107
    %p116 = scmp.eq.s32.totalorder %s21, 0
    %p117 = por %p115, %p116
    %p118 = scmp.ne.s32.totalorder %s106, %s107
    %p119 = scmp.eq.s32.totalorder %s22, 3
    %p120 = por %p118, %p119
    %p122 = scmp.ne.s32.totalorder %s107, %s121
    %p123 = scmp.eq.s32.totalorder %s22, 0
    %p124 = por %p122, %p123
    %s126 = sadd.s32 %s125, 1
    %p129 = scmp.eq.s32.totalorder %s16, 3
    %p130 = scmp.ne.s32.totalorder %s125, %s127
    %p131 = scmp.eq.s32.totalorder %s16, 0
    %p132 = por %p130, %p131
    %p133 = scmp.ne.s32.totalorder %s125, %s127
    %p134 = scmp.eq.s32.totalorder %s21, 3
    %p135 = por %p133, %p134
    %p136 = scmp.ne.s32.totalorder %s127, %s128
    %p137 = scmp.eq.s32.totalorder %s21, 0
    %p138 = por %p136, %p137
    %p139 = scmp.ne.s32.totalorder %s127, %s128
    %p140 = scmp.eq.s32.totalorder %s22, 3
    %p141 = por %p139, %p140
    %p143 = scmp.ne.s32.totalorder %s128, %s142
    %p144 = scmp.eq.s32.totalorder %s22, 0
    %p145 = por %p143, %p144
    %s147 = sadd.s32 %s146, 1
    %p150 = scmp.eq.s32.totalorder %s16, 3
    %p151 = scmp.ne.s32.totalorder %s146, %s148
    %p152 = scmp.eq.s32.totalorder %s16, 0
    %p153 = por %p151, %p152
    %p154 = scmp.ne.s32.totalorder %s146, %s148
    %p155 = scmp.eq.s32.totalorder %s21, 3
    %p156 = por %p154, %p155
    %p157 = scmp.ne.s32.totalorder %s148, %s149
    %p158 = scmp.eq.s32.totalorder %s21, 0
    %p159 = por %p157, %p158
    %p160 = scmp.ne.s32.totalorder %s148, %s149
    %p161 = scmp.eq.s32.totalorder %s22, 3
    %p162 = por %p160, %p161
    %p164 = scmp.ne.s32.totalorder %s149, %s163
    %p165 = scmp.eq.s32.totalorder %s22, 0
    %p166 = por %p164, %p165
    %s168 = sadd.s32 %s167, 1
    %p171 = scmp.eq.s32.totalorder %s16, 3
    %p172 = scmp.ne.s32.totalorder %s167, %s169
    %p173 = scmp.eq.s32.totalorder %s16, 0
    %p174 = por %p172, %p173
    %p175 = scmp.ne.s32.totalorder %s167, %s169
    %p176 = scmp.eq.s32.totalorder %s21, 3
    %p177 = por %p175, %p176
    %p178 = scmp.ne.s32.totalorder %s169, %s170
    %p179 = scmp.eq.s32.totalorder %s21, 0
    %p180 = por %p178, %p179
    %p181 = scmp.ne.s32.totalorder %s169, %s170
    %p182 = scmp.eq.s32.totalorder %s22, 3
    %p183 = por %p181, %p182
    %p185 = scmp.ne.s32.totalorder %s170, %s184
    %p186 = scmp.eq.s32.totalorder %s22, 0
    %p187 = por %p185, %p186
    %s189 = sadd.s32 %s188, 1
    %p192 = scmp.eq.s32.totalorder %s16, 3
    %p193 = scmp.ne.s32.totalorder %s188, %s190
    %p194 = scmp.eq.s32.totalorder %s16, 0
    %p195 = por %p193, %p194
    %p196 = scmp.ne.s32.totalorder %s188, %s190
    %p197 = scmp.eq.s32.totalorder %s21, 3
    %p198 = por %p196, %p197
    %p199 = scmp.ne.s32.totalorder %s190, %s191
    %p200 = scmp.eq.s32.totalorder %s21, 0
    %p201 = por %p199, %p200
    %p202 = scmp.ne.s32.totalorder %s190, %s191
    %p203 = scmp.eq.s32.totalorder %s22, 3
    %p204 = por %p202, %p203
    %p206 = scmp.ne.s32.totalorder %s191, %s205
    %p207 = scmp.eq.s32.totalorder %s22, 0
    %p208 = por %p206, %p207
    %s210 = sadd.s32 %s209, 1
    %p213 = scmp.eq.s32.totalorder %s16, 3
    %p214 = scmp.ne.s32.totalorder %s209, %s211
    %p215 = scmp.eq.s32.totalorder %s16, 0
    %p216 = por %p214, %p215
    %p217 = scmp.ne.s32.totalorder %s209, %s211
    %p218 = scmp.eq.s32.totalorder %s21, 3
    %p219 = por %p217, %p218
    %p220 = scmp.ne.s32.totalorder %s211, %s212
    %p221 = scmp.eq.s32.totalorder %s21, 0
    %p222 = por %p220, %p221
    %p223 = scmp.ne.s32.totalorder %s211, %s212
    %p224 = scmp.eq.s32.totalorder %s22, 3
    %p225 = por %p223, %p224
    %p227 = scmp.ne.s32.totalorder %s212, %s226
    %p228 = scmp.eq.s32.totalorder %s22, 0
    %p229 = por %p227, %p228
    %s231 = sadd.s32 %s230, 1
    %p234 = scmp.eq.s32.totalorder %s16, 3
    %p235 = scmp.ne.s32.totalorder %s230, %s232
    %p236 = scmp.eq.s32.totalorder %s16, 0
    %p237 = por %p235, %p236
    %p238 = scmp.ne.s32.totalorder %s230, %s232
    %p239 = scmp.eq.s32.totalorder %s21, 3
    %p240 = por %p238, %p239
    %p241 = scmp.ne.s32.totalorder %s232, %s233
    %p242 = scmp.eq.s32.totalorder %s21, 0
    %p243 = por %p241, %p242
    %p244 = scmp.ne.s32.totalorder %s232, %s233
    %p245 = scmp.eq.s32.totalorder %s22, 3
    %p246 = por %p244, %p245
    %p248 = scmp.ne.s32.totalorder %s233, %s247
    %p249 = scmp.eq.s32.totalorder %s22, 0
    %p250 = por %p248, %p249
    %s251 = ssub.s32 %s23, %s35
    %s252 = ssub.s32 %s24, %s31
    %s253 = sor.u32 %s251, %s252
    %p254 = scmp.eq.s32.totalorder %s253, 0
    %s256 = sadd.s32 %s255, 1
    %s257 = scalar_select %p254, %s255, %s256
    %p260 = pneg %p254
    %p261 = scmp.eq.s32.totalorder %s16, 3
    %p262 = por %p260, %p261
    %p263 = scmp.ne.s32.totalorder %s255, %s258
    %p264 = scmp.eq.s32.totalorder %s16, 0
    %p265 = por %p263, %p264
    %p266 = scmp.ne.s32.totalorder %s255, %s258
    %p267 = scmp.eq.s32.totalorder %s21, 3
    %p268 = por %p266, %p267
    %p269 = scmp.ne.s32.totalorder %s258, %s259
    %p270 = scmp.eq.s32.totalorder %s21, 0
    %p271 = por %p269, %p270
    %p272 = scmp.ne.s32.totalorder %s258, %s259
    %p273 = scmp.eq.s32.totalorder %s22, 3
    %p274 = por %p272, %p273
    %p276 = scmp.ne.s32.totalorder %s259, %s275
    %p277 = scmp.eq.s32.totalorder %s22, 0
    %p278 = por %p276, %p277
    %p279 = scmp.le.s32.totalorder 1, %s16
    %p280 = scmp.lt.s32.totalorder %s16, 5
    %p281 = pnand %p279, %p280
    %p282 = pneg %p281
    // Predicated region
    $region9: #{basic_block_forward.1} parent=5 // pred_check
      _
    $region10: #{basic_block_forward.1} parent=5 // pred_check_branch
      %284 = sbr.rel (%p281) target = $region12
    $region11: #{basic_block_forward.1} parent=5 // pred_region
      %s285 = ssub.s32 %s16, 1
      // Predicated region
      $region13: #{basic_block_forward.1} parent=11 // pred_check
        %p286 = pneg %p75
      $region14: #{basic_block_forward.1} parent=11 // pred_check_branch
        %288 = sbr.rel (%p286) target = $region16
      $region15: #{basic_block_forward.1} parent=11 // pred_region
        _
      $region16: #{basic_block_forward.1} parent=11 // pred_fallthru
        _
      // Predicated region
      $region17: #{basic_block_forward.1} parent=11 // pred_check
        %p289 = pneg %p96
      $region18: #{basic_block_forward.1} parent=11 // pred_check_branch
        %291 = sbr.rel (%p289) target = $region20
      $region19: #{basic_block_forward.1} parent=11 // pred_region
        _
      $region20: #{basic_block_forward.1} parent=11 // pred_fallthru
        _
      // Predicated region
      $region21: #{basic_block_forward.1} parent=11 // pred_check
        %p292 = pneg %p117
      $region22: #{basic_block_forward.1} parent=11 // pred_check_branch
        %294 = sbr.rel (%p292) target = $region24
      $region23: #{basic_block_forward.1} parent=11 // pred_region
        _
      $region24: #{basic_block_forward.1} parent=11 // pred_fallthru
        _
      // Predicated region
      $region25: #{basic_block_forward.1} parent=11 // pred_check
        %p295 = pneg %p138
      $region26: #{basic_block_forward.1} parent=11 // pred_check_branch
        %297 = sbr.rel (%p295) target = $region28
      $region27: #{basic_block_forward.1} parent=11 // pred_region
        _
      $region28: #{basic_block_forward.1} parent=11 // pred_fallthru
        _
      // Predicated region
      $region29: #{basic_block_forward.1} parent=11 // pred_check
        %p298 = pneg %p159
      $region30: #{basic_block_forward.1} parent=11 // pred_check_branch
        %300 = sbr.rel (%p298) target = $region32
      $region31: #{basic_block_forward.1} parent=11 // pred_region
        _
      $region32: #{basic_block_forward.1} parent=11 // pred_fallthru
        _
      // Predicated region
      $region33: #{basic_block_forward.1} parent=11 // pred_check
        %p301 = pneg %p180
      $region34: #{basic_block_forward.1} parent=11 // pred_check_branch
        %303 = sbr.rel (%p301) target = $region36
      $region35: #{basic_block_forward.1} parent=11 // pred_region
        _
      $region36: #{basic_block_forward.1} parent=11 // pred_fallthru
        _
      // Predicated region
      $region37: #{basic_block_forward.1} parent=11 // pred_check
        %p304 = pneg %p201
      $region38: #{basic_block_forward.1} parent=11 // pred_check_branch
        %306 = sbr.rel (%p304) target = $region40
      $region39: #{basic_block_forward.1} parent=11 // pred_region
        _
      $region40: #{basic_block_forward.1} parent=11 // pred_fallthru
        _
      // Predicated region
      $region41: #{basic_block_forward.1} parent=11 // pred_check
        %p307 = pneg %p222
      $region42: #{basic_block_forward.1} parent=11 // pred_check_branch
        %309 = sbr.rel (%p307) target = $region44
      $region43: #{basic_block_forward.1} parent=11 // pred_region
        _
      $region44: #{basic_block_forward.1} parent=11 // pred_fallthru
        _
      // Predicated region
      $region45: #{basic_block_forward.1} parent=11 // pred_check
        %p310 = pneg %p243
      $region46: #{basic_block_forward.1} parent=11 // pred_check_branch
        %312 = sbr.rel (%p310) target = $region48
      $region47: #{basic_block_forward.1} parent=11 // pred_region
        _
      $region48: #{basic_block_forward.1} parent=11 // pred_fallthru
        _
    $region12: #{basic_block_forward.1} parent=5 // pred_fallthru
      _
    %p313 = scmp.lt.s32.totalorder %s16, 4
    // Predicated region
    $region49: #{basic_block_forward.1} parent=5 // pred_check
      %p314 = pneg %p313
    $region50: #{basic_block_forward.1} parent=5 // pred_check_branch
      %316 = sbr.rel (%p314) target = $region52
    $region51: #{basic_block_forward.1} parent=5 // pred_region
      // Predicated region
      $region53: #{basic_block_forward.1} parent=51 // pred_check
        %p317 = pneg %p48
      $region54: #{basic_block_forward.1} parent=51 // pred_check_branch
        %319 = sbr.rel (%p317) target = $region56
      $region55: #{basic_block_forward.1} parent=51 // pred_region
        %p320 = scmp.lt.s32.totalorder %s23, 1
        %s321 = scalar_select %p320, %s23, 1
        %s322 = smul.addr %s321, 36
        %s323 = smul.addr %s322, 4
        %s324 = scalar_lea.vmem %s0, %s323
      $region56: #{basic_block_forward.1} parent=51 // pred_fallthru
        _
    $region52: #{basic_block_forward.1} parent=5 // pred_fallthru
      _
    %p325 = scmp.le.s32.totalorder 1, %s16
    %p326 = scmp.lt.s32.totalorder %s16, 5
    %p327 = pnand %p325, %p326
    %p328 = pneg %p327
    // Predicated region
    $region57: #{basic_block_forward.1} parent=5 // pred_check
      _
    $region58: #{basic_block_forward.1} parent=5 // pred_check_branch
      %330 = sbr.rel (%p327) target = $region60
    $region59: #{basic_block_forward.1} parent=5 // pred_region
      %s331 = ssub.s32 %s16, 1
      %p332 = scmp.lt.s32.totalorder %s25, 1
      %s333 = scalar_select %p332, %s25, 1
      %s334 = smul.addr %s333, 36
      %s335 = smul.addr %s334, 4
      %s336 = scalar_lea.vmem %s0, %s335
      %p337 = pneg %p54
      %p338 = pneg %p51
      %p339 = pneg %p75
      %p340 = pneg %p72
      %p341 = pneg %p96
      %p342 = pneg %p93
      %p343 = pneg %p117
      %p344 = pneg %p114
      %p345 = pneg %p138
      %p346 = pneg %p135
      %p347 = pneg %p159
      %p348 = pneg %p156
      %p349 = pneg %p180
      %p350 = pneg %p177
      %p351 = pneg %p201
      %p352 = pneg %p198
      %p353 = pneg %p222
      %p354 = pneg %p219
      %p355 = pneg %p243
      %p356 = pneg %p240
      %p357 = pneg %p271
      %p358 = pneg %p268
      %s359 = smul.u32 16, %s26
      %p360 = scmp.lt.s32.totalorder %s25, 1
      %s361 = scalar_select %p360, %s25, 1
      %p362 = scmp.lt.s32.totalorder %s359, 31
      %s363 = scalar_select %p362, %s359, 31
      %s364 = smul.addr %s361, 32
      %s365 = sadd.s32 %s363, %s364
      %s366 = smul.addr %s365, 8
      %s367 = scalar_lea.vmem %s10, %s366
      %p368 = scmp.lt.s32.totalorder %s25, 1
      %s369 = scalar_select %p368, %s25, 1
      %s370 = smul.addr %s369, 36
      %s371 = smul.addr %s370, 4
      %s372 = scalar_lea.vmem %s0, %s371
      %s373 = smul.u32 16, %s26
      %p374 = scmp.lt.s32.totalorder %s25, 1
      %s375 = scalar_select %p374, %s25, 1
      %p376 = scmp.lt.s32.totalorder %s373, 31
      %s377 = scalar_select %p376, %s373, 31
      %s378 = smul.addr %s375, 32
      %s379 = sadd.s32 %s377, %s378
      %s380 = smul.addr %s379, 8
      %s381 = scalar_lea.vmem %s10, %s380
      %s382 = smul.u32 16, %s26
      %s384 = smul.u32 %s26, 128
      %s385 = sshra.s32 %s384, 3
      %s386 = sand.u32 %s384, 7
      %s387 = smul.addr %s385, 4
      %s388 = scalar_lea.vmem %s372, %s387
      %v389 = vld [vmem:[%s388] sm:$0xf]
      %v390 = vld [vmem:[%s388 + $0x4] sm:$0xf]
      %v391 = vld [vmem:[%s388 + $0x8] sm:$0xf]
      %v392 = vld [vmem:[%s388 + $0xc] sm:$0xf]
      %v393 = vld [vmem:[%s388 + $0x10] sm:$0xf]
      %v394 = vld [vmem:[%s388 + $0x14] sm:$0xf]
      %v395 = vld [vmem:[%s388 + $0x18] sm:$0xf]
      %v396 = vld [vmem:[%s388 + $0x1c] sm:$0xf]
      %v397 = vld [vmem:[%s388 + $0x20] sm:$0xf]
      %v398 = vld [vmem:[%s388 + $0x24] sm:$0xf]
      %v399 = vld [vmem:[%s388 + $0x28] sm:$0xf]
      %v400 = vld [vmem:[%s388 + $0x2c] sm:$0xf]
      %v401 = vld [vmem:[%s388 + $0x30] sm:$0xf]
      %v402 = vld [vmem:[%s388 + $0x34] sm:$0xf]
      %v403 = vld [vmem:[%s388 + $0x38] sm:$0xf]
      %v404 = vld [vmem:[%s388 + $0x3c] sm:$0xf]
      %v405 = vld [vmem:[%s388 + $0x40] sm:$0xf]
      %v406 = vld [vmem:[%s388 + $0x44] sm:$0xf]
      %v407 = vld [vmem:[%s388 + $0x48] sm:$0xf]
      %v408 = vld [vmem:[%s388 + $0x4c] sm:$0xf]
      %v409 = vunpack.c.l.bf16 %v389
      %v410 = vunpack.c.l.bf16 %v390
      %v411 = vunpack.c.l.bf16 %v391
      %v412 = vunpack.c.l.bf16 %v392
      %v413 = vunpack.c.l.bf16 %v393
      %v414 = vunpack.c.l.bf16 %v394
      %v415 = vunpack.c.l.bf16 %v395
      %v416 = vunpack.c.l.bf16 %v396
      %v417 = vunpack.c.l.bf16 %v397
      %v418 = vunpack.c.l.bf16 %v398
      %v419 = vunpack.c.l.bf16 %v399
      %v420 = vunpack.c.l.bf16 %v400
      %v421 = vunpack.c.l.bf16 %v401
      %v422 = vunpack.c.l.bf16 %v402
      %v423 = vunpack.c.l.bf16 %v403
      %v424 = vunpack.c.l.bf16 %v404
      %v425 = vunpack.c.l.bf16 %v405
      %v426 = vunpack.c.l.bf16 %v406
      %v427 = vunpack.c.l.bf16 %v407
      %v428 = vunpack.c.l.bf16 %v408
      %v429 = vld [vmem:[%s1] sm:$0x1]
      %v431 = vperm.slane %v429, 0
      %v433 = vmul.f32 %v409, %v431
      %v434 = vmul.f32 %v410, %v431
      %v435 = vmul.f32 %v411, %v431
      %v436 = vmul.f32 %v412, %v431
      %v437 = vmul.f32 %v413, %v431
      %v438 = vmul.f32 %v414, %v431
      %v439 = vmul.f32 %v415, %v431
      %v440 = vmul.f32 %v416, %v431
      %v441 = vmul.f32 %v417, %v431
      %v442 = vmul.f32 %v418, %v431
      %v443 = vmul.f32 %v419, %v431
      %v444 = vmul.f32 %v420, %v431
      %v445 = vmul.f32 %v421, %v431
      %v446 = vmul.f32 %v422, %v431
      %v447 = vmul.f32 %v423, %v431
      %v448 = vmul.f32 %v424, %v431
      %v449 = vmul.f32 %v425, %v431
      %v450 = vmul.f32 %v426, %v431
      %v451 = vmul.f32 %v427, %v431
      %v452 = vmul.f32 %v428, %v431
      %v453 = vld [vmem:[%s2] sm:$0x1]
      %v455 = vperm.slane %v453, 0
      %v457 = vadd.f32 %v433, %v455
      %v458 = vadd.f32 %v434, %v455
      %v459 = vadd.f32 %v435, %v455
      %v460 = vadd.f32 %v436, %v455
      %v461 = vadd.f32 %v437, %v455
      %v462 = vadd.f32 %v438, %v455
      %v463 = vadd.f32 %v439, %v455
      %v464 = vadd.f32 %v440, %v455
      %v465 = vadd.f32 %v441, %v455
      %v466 = vadd.f32 %v442, %v455
      %v467 = vadd.f32 %v443, %v455
      %v468 = vadd.f32 %v444, %v455
      %v469 = vadd.f32 %v445, %v455
      %v470 = vadd.f32 %v446, %v455
      %v471 = vadd.f32 %v447, %v455
      %v472 = vadd.f32 %v448, %v455
      %v473 = vadd.f32 %v449, %v455
      %v474 = vadd.f32 %v450, %v455
      %v475 = vadd.f32 %v451, %v455
      %v476 = vadd.f32 %v452, %v455
      %v477 = vmax.f32 %v457, 0.0
      %v478 = vmax.f32 %v458, 0.0
      %v479 = vmax.f32 %v459, 0.0
      %v480 = vmax.f32 %v460, 0.0
      %v481 = vmax.f32 %v461, 0.0
      %v482 = vmax.f32 %v462, 0.0
      %v483 = vmax.f32 %v463, 0.0
      %v484 = vmax.f32 %v464, 0.0
      %v485 = vmax.f32 %v465, 0.0
      %v486 = vmax.f32 %v466, 0.0
      %v487 = vmax.f32 %v467, 0.0
      %v488 = vmax.f32 %v468, 0.0
      %v489 = vmax.f32 %v469, 0.0
      %v490 = vmax.f32 %v470, 0.0
      %v491 = vmax.f32 %v471, 0.0
      %v492 = vmax.f32 %v472, 0.0
      %v493 = vmax.f32 %v473, 0.0
      %v494 = vmax.f32 %v474, 0.0
      %v495 = vmax.f32 %v475, 0.0
      %v496 = vmax.f32 %v476, 0.0
      %v497 = vpack.c.bf16 %v478, %v477
      %v498 = vpack.c.bf16 %v480, %v479
      %v499 = vpack.c.bf16 %v482, %v481
      %v500 = vpack.c.bf16 %v484, %v483
      %v501 = vpack.c.bf16 %v486, %v485
      %v502 = vpack.c.bf16 %v488, %v487
      %v503 = vpack.c.bf16 %v490, %v489
      %v504 = vpack.c.bf16 %v492, %v491
      %v505 = vpack.c.bf16 %v494, %v493
      %v506 = vpack.c.bf16 %v496, %v495
      %v507 = vld [vmem:[%s3] sm:$0xf]
      %v508 = vld [vmem:[%s3 + $0x4] sm:$0xf]
      %v511 = vunpack.c.l.b16 %v507
      %v512 = vunpack.c.l.b16 %v508
      %v513 = vpack.c.b16 %v512, %v511
      %vm515 = vcmask 130048
      %v517 = vsel %vm515, %v497, 0
      %v520 = vsel %vm515, %v498, 0
      %v523 = vsel %vm515, %v499, 0
      %v526 = vsel %vm515, %v500, 0
      %v529 = vsel %vm515, %v501, 0
      %v532 = vsel %vm515, %v502, 0
      %v535 = vsel %vm515, %v503, 0
      %v538 = vsel %vm515, %v504, 0
      %v541 = vsel %vm515, %v505, 0
      %v544 = vsel %vm515, %v506, 0
      %546 = vmatpush.bf16.msra.mxu0 0
      %547 = vmatpush.bf16.msra.mxu0 0
      %548 = vmatpush.bf16.msra.mxu0 0
      %549 = vmatpush.bf16.msra.mxu0 0
      %550 = vmatpush.bf16.msra.mxu0 0
      %551 = vmatpush.bf16.msra.mxu0 0
      %552 = vmatpush.bf16.msra.mxu0 0
      %553 = vmatpush.bf16.msra.mxu0 %v513
      %554 = vmatmul.bf16.gmra.mxu0 %v517
      %v555 = vpop.f32.mrf.mxu0
      %v556 = vadd.f32 0.0, %v555
      %v557 = vpop.f32.mrf.mxu0
      %v558 = vadd.f32 0.0, %v557
      %559 = vmatmul.bf16.gmra.mxu0 %v520
      %v560 = vpop.f32.mrf.mxu0
      %v561 = vadd.f32 0.0, %v560
      %v562 = vpop.f32.mrf.mxu0
      %v563 = vadd.f32 0.0, %v562
      %564 = vmatmul.bf16.gmra.mxu0 %v523
      %v565 = vpop.f32.mrf.mxu0
      %v566 = vadd.f32 0.0, %v565
      %v567 = vpop.f32.mrf.mxu0
      %v568 = vadd.f32 0.0, %v567
      %569 = vmatmul.bf16.gmra.mxu0 %v526
      %v570 = vpop.f32.mrf.mxu0
      %v571 = vadd.f32 0.0, %v570
      %v572 = vpop.f32.mrf.mxu0
      %v573 = vadd.f32 0.0, %v572
      %574 = vmatmul.bf16.gmra.mxu0 %v529
      %v575 = vpop.f32.mrf.mxu0
      %v576 = vadd.f32 0.0, %v575
      %v577 = vpop.f32.mrf.mxu0
      %v578 = vadd.f32 0.0, %v577
      %579 = vmatmul.bf16.gmra.mxu0 %v532
      %v580 = vpop.f32.mrf.mxu0
      %v581 = vadd.f32 0.0, %v580
      %v582 = vpop.f32.mrf.mxu0
      %v583 = vadd.f32 0.0, %v582
      %584 = vmatmul.bf16.gmra.mxu0 %v535
      %v585 = vpop.f32.mrf.mxu0
      %v586 = vadd.f32 0.0, %v585
      %v587 = vpop.f32.mrf.mxu0
      %v588 = vadd.f32 0.0, %v587
      %589 = vmatmul.bf16.gmra.mxu0 %v538
      %v590 = vpop.f32.mrf.mxu0
      %v591 = vadd.f32 0.0, %v590
      %v592 = vpop.f32.mrf.mxu0
      %v593 = vadd.f32 0.0, %v592
      %594 = vmatmul.bf16.gmra.mxu0 %v541
      %v595 = vpop.f32.mrf.mxu0
      %v596 = vadd.f32 0.0, %v595
      %v597 = vpop.f32.mrf.mxu0
      %v598 = vadd.f32 0.0, %v597
      %599 = vmatmul.bf16.gmra.mxu0 %v544
      %v600 = vpop.f32.mrf.mxu0
      %v601 = vadd.f32 0.0, %v600
      %v602 = vpop.f32.mrf.mxu0
      %v603 = vadd.f32 0.0, %v602
      %604 = vdwg.mxu0
      %v605 = vld [vmem:[%s4] sm:$0x1]
      %v607 = vperm.slane %v605, 0
      %v609 = vmul.f32 %v556, %v607
      %v610 = vmul.f32 %v558, %v607
      %v611 = vmul.f32 %v561, %v607
      %v612 = vmul.f32 %v563, %v607
      %v613 = vmul.f32 %v566, %v607
      %v614 = vmul.f32 %v568, %v607
      %v615 = vmul.f32 %v571, %v607
      %v616 = vmul.f32 %v573, %v607
      %v617 = vmul.f32 %v576, %v607
      %v618 = vmul.f32 %v578, %v607
      %v619 = vmul.f32 %v581, %v607
      %v620 = vmul.f32 %v583, %v607
      %v621 = vmul.f32 %v586, %v607
      %v622 = vmul.f32 %v588, %v607
      %v623 = vmul.f32 %v591, %v607
      %v624 = vmul.f32 %v593, %v607
      %v625 = vmul.f32 %v596, %v607
      %v626 = vmul.f32 %v598, %v607
      %v627 = vmul.f32 %v601, %v607
      %v628 = vmul.f32 %v603, %v607
      %v629 = vld [vmem:[%s5] sm:$0x1]
      %v631 = vperm.slane %v629, 0
      %v633 = vadd.f32 %v609, %v631
      %v634 = vadd.f32 %v610, %v631
      %v635 = vadd.f32 %v611, %v631
      %v636 = vadd.f32 %v612, %v631
      %v637 = vadd.f32 %v613, %v631
      %v638 = vadd.f32 %v614, %v631
      %v639 = vadd.f32 %v615, %v631
      %v640 = vadd.f32 %v616, %v631
      %v641 = vadd.f32 %v617, %v631
      %v642 = vadd.f32 %v618, %v631
      %v643 = vadd.f32 %v619, %v631
      %v644 = vadd.f32 %v620, %v631
      %v645 = vadd.f32 %v621, %v631
      %v646 = vadd.f32 %v622, %v631
      %v647 = vadd.f32 %v623, %v631
      %v648 = vadd.f32 %v624, %v631
      %v649 = vadd.f32 %v625, %v631
      %v650 = vadd.f32 %v626, %v631
      %v651 = vadd.f32 %v627, %v631
      %v652 = vadd.f32 %v628, %v631
      %v653 = vmax.f32 %v633, 0.0
      %v654 = vmax.f32 %v634, 0.0
      %v655 = vmax.f32 %v635, 0.0
      %v656 = vmax.f32 %v636, 0.0
      %v657 = vmax.f32 %v637, 0.0
      %v658 = vmax.f32 %v638, 0.0
      %v659 = vmax.f32 %v639, 0.0
      %v660 = vmax.f32 %v640, 0.0
      %v661 = vmax.f32 %v641, 0.0
      %v662 = vmax.f32 %v642, 0.0
      %v663 = vmax.f32 %v643, 0.0
      %v664 = vmax.f32 %v644, 0.0
      %v665 = vmax.f32 %v645, 0.0
      %v666 = vmax.f32 %v646, 0.0
      %v667 = vmax.f32 %v647, 0.0
      %v668 = vmax.f32 %v648, 0.0
      %v669 = vmax.f32 %v649, 0.0
      %v670 = vmax.f32 %v650, 0.0
      %v671 = vmax.f32 %v651, 0.0
      %v672 = vmax.f32 %v652, 0.0
      %v673 = vlaneseq
      %v674 = vshrl.u32 %v673, 7
      %v675 = vadd.s32 %v674, 8
      %v676 = vadd.s32 %v674, 16
      %v677 = vadd.s32 %v674, 24
      %v678 = vadd.s32 %v674, 32
      %v679 = vadd.s32 %v674, 40
      %v680 = vadd.s32 %v674, 48
      %v681 = vadd.s32 %v674, 56
      %v682 = vadd.s32 %v674, 64
      %v683 = vadd.s32 %v674, 72
      %v684 = vadd.s32 %v674, 80
      %v685 = vadd.s32 %v674, 88
      %v686 = vadd.s32 %v674, 96
      %v687 = vadd.s32 %v674, 104
      %v688 = vadd.s32 %v674, 112
      %v689 = vadd.s32 %v674, 120
      %v690 = vstv %s384
      %v691 = vadd.s32 %v674, %v690
      %v692 = vadd.s32 %v675, %v690
      %v693 = vadd.s32 %v676, %v690
      %v694 = vadd.s32 %v677, %v690
      %v695 = vadd.s32 %v678, %v690
      %v696 = vadd.s32 %v679, %v690
      %v697 = vadd.s32 %v680, %v690
      %v698 = vadd.s32 %v681, %v690
      %v699 = vadd.s32 %v682, %v690
      %v700 = vadd.s32 %v683, %v690
      %v701 = vadd.s32 %v684, %v690
      %v702 = vadd.s32 %v685, %v690
      %v703 = vadd.s32 %v686, %v690
      %v704 = vadd.s32 %v687, %v690
      %v705 = vadd.s32 %v688, %v690
      %v706 = vadd.s32 %v689, %v690
      %vm707 = vcmp.ge.s32.totalorder %v691, 16
      %vm708 = vcmp.ge.s32.totalorder %v692, 16
      %vm709 = vcmp.ge.s32.totalorder %v693, 16
      %vm710 = vcmp.ge.s32.totalorder %v694, 16
      %vm711 = vcmp.ge.s32.totalorder %v695, 16
      %vm712 = vcmp.ge.s32.totalorder %v696, 16
      %vm713 = vcmp.ge.s32.totalorder %v697, 16
      %vm714 = vcmp.ge.s32.totalorder %v698, 16
      %vm715 = vcmp.ge.s32.totalorder %v699, 16
      %vm716 = vcmp.ge.s32.totalorder %v700, 16
      %vm717 = vcmp.ge.s32.totalorder %v701, 16
      %vm718 = vcmp.ge.s32.totalorder %v702, 16
      %vm719 = vcmp.ge.s32.totalorder %v703, 16
      %vm720 = vcmp.ge.s32.totalorder %v704, 16
      %vm721 = vcmp.ge.s32.totalorder %v705, 16
      %vm722 = vcmp.ge.s32.totalorder %v706, 16
      %v723 = vsel %vm707, 1, 0
      %v724 = vsel %vm708, 1, 0
      %v725 = vsel %vm709, 1, 0
      %v726 = vsel %vm710, 1, 0
      %v727 = vsel %vm711, 1, 0
      %v728 = vsel %vm712, 1, 0
      %v729 = vsel %vm713, 1, 0
      %v730 = vsel %vm714, 1, 0
      %v731 = vsel %vm715, 1, 0
      %v732 = vsel %vm716, 1, 0
      %v733 = vsel %vm717, 1, 0
      %v734 = vsel %vm718, 1, 0
      %v735 = vsel %vm719, 1, 0
      %v736 = vsel %vm720, 1, 0
      %v737 = vsel %vm721, 1, 0
      %v738 = vsel %vm722, 1, 0
      %v739 = vcvt.s32.f32 %v723
      %v740 = vcvt.s32.f32 %v724
      %v741 = vcvt.s32.f32 %v725
      %v742 = vcvt.s32.f32 %v726
      %v743 = vcvt.s32.f32 %v727
      %v744 = vcvt.s32.f32 %v728
      %v745 = vcvt.s32.f32 %v729
      %v746 = vcvt.s32.f32 %v730
      %v747 = vcvt.s32.f32 %v731
      %v748 = vcvt.s32.f32 %v732
      %v749 = vcvt.s32.f32 %v733
      %v750 = vcvt.s32.f32 %v734
      %v751 = vcvt.s32.f32 %v735
      %v752 = vcvt.s32.f32 %v736
      %v753 = vcvt.s32.f32 %v737
      %v754 = vcvt.s32.f32 %v738
      %vm755 = vcmp.lt.s32.totalorder %v691, 240
      %vm756 = vcmp.lt.s32.totalorder %v692, 240
      %vm757 = vcmp.lt.s32.totalorder %v693, 240
      %vm758 = vcmp.lt.s32.totalorder %v694, 240
      %vm759 = vcmp.lt.s32.totalorder %v695, 240
      %vm760 = vcmp.lt.s32.totalorder %v696, 240
      %vm761 = vcmp.lt.s32.totalorder %v697, 240
      %vm762 = vcmp.lt.s32.totalorder %v698, 240
      %vm763 = vcmp.lt.s32.totalorder %v699, 240
      %vm764 = vcmp.lt.s32.totalorder %v700, 240
      %vm765 = vcmp.lt.s32.totalorder %v701, 240
      %vm766 = vcmp.lt.s32.totalorder %v702, 240
      %vm767 = vcmp.lt.s32.totalorder %v703, 240
      %vm768 = vcmp.lt.s32.totalorder %v704, 240
      %vm769 = vcmp.lt.s32.totalorder %v705, 240
      %vm770 = vcmp.lt.s32.totalorder %v706, 240
      %v771 = vsel %vm755, 1, 0
      %v772 = vsel %vm756, 1, 0
      %v773 = vsel %vm757, 1, 0
      %v774 = vsel %vm758, 1, 0
      %v775 = vsel %vm759, 1, 0
      %v776 = vsel %vm760, 1, 0
      %v777 = vsel %vm761, 1, 0
      %v778 = vsel %vm762, 1, 0
      %v779 = vsel %vm763, 1, 0
      %v780 = vsel %vm764, 1, 0
      %v781 = vsel %vm765, 1, 0
      %v782 = vsel %vm766, 1, 0
      %v783 = vsel %vm767, 1, 0
      %v784 = vsel %vm768, 1, 0
      %v785 = vsel %vm769, 1, 0
      %v786 = vsel %vm770, 1, 0
      %v787 = vcvt.s32.f32 %v771
      %v788 = vcvt.s32.f32 %v772
      %v789 = vcvt.s32.f32 %v773
      %v790 = vcvt.s32.f32 %v774
      %v791 = vcvt.s32.f32 %v775
      %v792 = vcvt.s32.f32 %v776
      %v793 = vcvt.s32.f32 %v777
      %v794 = vcvt.s32.f32 %v778
      %v795 = vcvt.s32.f32 %v779
      %v796 = vcvt.s32.f32 %v780
      %v797 = vcvt.s32.f32 %v781
      %v798 = vcvt.s32.f32 %v782
      %v799 = vcvt.s32.f32 %v783
      %v800 = vcvt.s32.f32 %v784
      %v801 = vcvt.s32.f32 %v785
      %v802 = vcvt.s32.f32 %v786
      %vm803 = vcmp.lt.s32.totalorder %v674, 0
      %v804 = vsub.s32 0, %v674
      %v805 = vsel %vm803, %v804, %v674
      %v806 = vshrl.u32 %v805, 4
      %v807 = vand.u32 %v805, 15
      %v808 = vsub.s32 0, %v807
      %v809 = vsel %vm803, %v808, %v807
      %vm810 = vcmp.lt.s32.totalorder %v675, 0
      %v811 = vsub.s32 0, %v675
      %v812 = vsel %vm810, %v811, %v675
      %v813 = vshrl.u32 %v812, 4
      %v814 = vand.u32 %v812, 15
      %v815 = vsub.s32 0, %v814
      %v816 = vsel %vm810, %v815, %v814
      %vm817 = vcmp.lt.s32.totalorder %v676, 0
      %v818 = vsub.s32 0, %v676
      %v819 = vsel %vm817, %v818, %v676
      %v820 = vshrl.u32 %v819, 4
      %v821 = vand.u32 %v819, 15
      %v822 = vsub.s32 0, %v821
      %v823 = vsel %vm817, %v822, %v821
      %vm824 = vcmp.lt.s32.totalorder %v677, 0
      %v825 = vsub.s32 0, %v677
      %v826 = vsel %vm824, %v825, %v677
      %v827 = vshrl.u32 %v826, 4
      %v828 = vand.u32 %v826, 15
      %v829 = vsub.s32 0, %v828
      %v830 = vsel %vm824, %v829, %v828
      %vm831 = vcmp.lt.s32.totalorder %v678, 0
      %v832 = vsub.s32 0, %v678
      %v833 = vsel %vm831, %v832, %v678
      %v834 = vshrl.u32 %v833, 4
      %v835 = vand.u32 %v833, 15
      %v836 = vsub.s32 0, %v835
      %v837 = vsel %vm831, %v836, %v835
      %vm838 = vcmp.lt.s32.totalorder %v679, 0
      %v839 = vsub.s32 0, %v679
      %v840 = vsel %vm838, %v839, %v679
      %v841 = vshrl.u32 %v840, 4
      %v842 = vand.u32 %v840, 15
      %v843 = vsub.s32 0, %v842
      %v844 = vsel %vm838, %v843, %v842
      %vm845 = vcmp.lt.s32.totalorder %v680, 0
      %v846 = vsub.s32 0, %v680
      %v847 = vsel %vm845, %v846, %v680
      %v848 = vshrl.u32 %v847, 4
      %v849 = vand.u32 %v847, 15
      %v850 = vsub.s32 0, %v849
      %v851 = vsel %vm845, %v850, %v849
      %vm852 = vcmp.lt.s32.totalorder %v681, 0
      %v853 = vsub.s32 0, %v681
      %v854 = vsel %vm852, %v853, %v681
      %v855 = vshrl.u32 %v854, 4
      %v856 = vand.u32 %v854, 15
      %v857 = vsub.s32 0, %v856
      %v858 = vsel %vm852, %v857, %v856
      %vm859 = vcmp.lt.s32.totalorder %v682, 0
      %v860 = vsub.s32 0, %v682
      %v861 = vsel %vm859, %v860, %v682
      %v862 = vshrl.u32 %v861, 4
      %v863 = vand.u32 %v861, 15
      %v864 = vsub.s32 0, %v863
      %v865 = vsel %vm859, %v864, %v863
      %vm866 = vcmp.lt.s32.totalorder %v683, 0
      %v867 = vsub.s32 0, %v683
      %v868 = vsel %vm866, %v867, %v683
      %v869 = vshrl.u32 %v868, 4
      %v870 = vand.u32 %v868, 15
      %v871 = vsub.s32 0, %v870
      %v872 = vsel %vm866, %v871, %v870
      %vm873 = vcmp.lt.s32.totalorder %v684, 0
      %v874 = vsub.s32 0, %v684
      %v875 = vsel %vm873, %v874, %v684
      %v876 = vshrl.u32 %v875, 4
      %v877 = vand.u32 %v875, 15
      %v878 = vsub.s32 0, %v877
      %v879 = vsel %vm873, %v878, %v877
      %vm880 = vcmp.lt.s32.totalorder %v685, 0
      %v881 = vsub.s32 0, %v685
      %v882 = vsel %vm880, %v881, %v685
      %v883 = vshrl.u32 %v882, 4
      %v884 = vand.u32 %v882, 15
      %v885 = vsub.s32 0, %v884
      %v886 = vsel %vm880, %v885, %v884
      %vm887 = vcmp.lt.s32.totalorder %v686, 0
      %v888 = vsub.s32 0, %v686
      %v889 = vsel %vm887, %v888, %v686
      %v890 = vshrl.u32 %v889, 4
      %v891 = vand.u32 %v889, 15
      %v892 = vsub.s32 0, %v891
      %v893 = vsel %vm887, %v892, %v891
      %vm894 = vcmp.lt.s32.totalorder %v687, 0
      %v895 = vsub.s32 0, %v687
      %v896 = vsel %vm894, %v895, %v687
      %v897 = vshrl.u32 %v896, 4
      %v898 = vand.u32 %v896, 15
      %v899 = vsub.s32 0, %v898
      %v900 = vsel %vm894, %v899, %v898
      %vm901 = vcmp.lt.s32.totalorder %v688, 0
      %v902 = vsub.s32 0, %v688
      %v903 = vsel %vm901, %v902, %v688
      %v904 = vshrl.u32 %v903, 4
      %v905 = vand.u32 %v903, 15
      %v906 = vsub.s32 0, %v905
      %v907 = vsel %vm901, %v906, %v905
      %vm908 = vcmp.lt.s32.totalorder %v689, 0
      %v909 = vsub.s32 0, %v689
      %v910 = vsel %vm908, %v909, %v689
      %v911 = vshrl.u32 %v910, 4
      %v912 = vand.u32 %v910, 15
      %v913 = vsub.s32 0, %v912
      %v914 = vsel %vm908, %v913, %v912
      %vm915 = vcmp.ne.s32.totalorder %v809, 0
      %vm916 = vcmp.ne.s32.totalorder %v816, 0
      %vm917 = vcmp.ne.s32.totalorder %v823, 0
      %vm918 = vcmp.ne.s32.totalorder %v830, 0
      %vm919 = vcmp.ne.s32.totalorder %v837, 0
      %vm920 = vcmp.ne.s32.totalorder %v844, 0
      %vm921 = vcmp.ne.s32.totalorder %v851, 0
      %vm922 = vcmp.ne.s32.totalorder %v858, 0
      %vm923 = vcmp.ne.s32.totalorder %v865, 0
      %vm924 = vcmp.ne.s32.totalorder %v872, 0
      %vm925 = vcmp.ne.s32.totalorder %v879, 0
      %vm926 = vcmp.ne.s32.totalorder %v886, 0
      %vm927 = vcmp.ne.s32.totalorder %v893, 0
      %vm928 = vcmp.ne.s32.totalorder %v900, 0
      %vm929 = vcmp.ne.s32.totalorder %v907, 0
      %vm930 = vcmp.ne.s32.totalorder %v914, 0
      %vm931 = vcmp.lt.s32.totalorder %v809, 0
      %vm932 = vcmp.lt.s32.totalorder %v816, 0
      %vm933 = vcmp.lt.s32.totalorder %v823, 0
      %vm934 = vcmp.lt.s32.totalorder %v830, 0
      %vm935 = vcmp.lt.s32.totalorder %v837, 0
      %vm936 = vcmp.lt.s32.totalorder %v844, 0
      %vm937 = vcmp.lt.s32.totalorder %v851, 0
      %vm938 = vcmp.lt.s32.totalorder %v858, 0
      %vm939 = vcmp.lt.s32.totalorder %v865, 0
      %vm940 = vcmp.lt.s32.totalorder %v872, 0
      %vm941 = vcmp.lt.s32.totalorder %v879, 0
      %vm942 = vcmp.lt.s32.totalorder %v886, 0
      %vm943 = vcmp.lt.s32.totalorder %v893, 0
      %vm944 = vcmp.lt.s32.totalorder %v900, 0
      %vm945 = vcmp.lt.s32.totalorder %v907, 0
      %vm946 = vcmp.lt.s32.totalorder %v914, 0
      %vm947 = vmand %vm931, %vm915
      %vm948 = vmand %vm932, %vm916
      %vm949 = vmand %vm933, %vm917
      %vm950 = vmand %vm934, %vm918
      %vm951 = vmand %vm935, %vm919
      %vm952 = vmand %vm936, %vm920
      %vm953 = vmand %vm937, %vm921
      %vm954 = vmand %vm938, %vm922
      %vm955 = vmand %vm939, %vm923
      %vm956 = vmand %vm940, %vm924
      %vm957 = vmand %vm941, %vm925
      %vm958 = vmand %vm942, %vm926
      %vm959 = vmand %vm943, %vm927
      %vm960 = vmand %vm944, %vm928
      %vm961 = vmand %vm945, %vm929
      %vm962 = vmand %vm946, %vm930
      %v963 = vadd.s32 %v809, 16
      %v964 = vadd.s32 %v816, 16
      %v965 = vadd.s32 %v823, 16
      %v966 = vadd.s32 %v830, 16
      %v967 = vadd.s32 %v837, 16
      %v968 = vadd.s32 %v844, 16
      %v969 = vadd.s32 %v851, 16
      %v970 = vadd.s32 %v858, 16
      %v971 = vadd.s32 %v865, 16
      %v972 = vadd.s32 %v872, 16
      %v973 = vadd.s32 %v879, 16
      %v974 = vadd.s32 %v886, 16
      %v975 = vadd.s32 %v893, 16
      %v976 = vadd.s32 %v900, 16
      %v977 = vadd.s32 %v907, 16
      %v978 = vadd.s32 %v914, 16
      %v979 = vsel %vm947, %v963, %v809
      %v980 = vsel %vm948, %v964, %v816
      %v981 = vsel %vm949, %v965, %v823
      %v982 = vsel %vm950, %v966, %v830
      %v983 = vsel %vm951, %v967, %v837
      %v984 = vsel %vm952, %v968, %v844
      %v985 = vsel %vm953, %v969, %v851
      %v986 = vsel %vm954, %v970, %v858
      %v987 = vsel %vm955, %v971, %v865
      %v988 = vsel %vm956, %v972, %v872
      %v989 = vsel %vm957, %v973, %v879
      %v990 = vsel %vm958, %v974, %v886
      %v991 = vsel %vm959, %v975, %v893
      %v992 = vsel %vm960, %v976, %v900
      %v993 = vsel %vm961, %v977, %v907
      %v994 = vsel %vm962, %v978, %v914
      %vm995 = vcmp.ge.s32.totalorder %v979, 1
      %vm996 = vcmp.ge.s32.totalorder %v980, 1
      %vm997 = vcmp.ge.s32.totalorder %v981, 1
      %vm998 = vcmp.ge.s32.totalorder %v982, 1
      %vm999 = vcmp.ge.s32.totalorder %v983, 1
      %vm1000 = vcmp.ge.s32.totalorder %v984, 1
      %vm1001 = vcmp.ge.s32.totalorder %v985, 1
      %vm1002 = vcmp.ge.s32.totalorder %v986, 1
      %vm1003 = vcmp.ge.s32.totalorder %v987, 1
      %vm1004 = vcmp.ge.s32.totalorder %v988, 1
      %vm1005 = vcmp.ge.s32.totalorder %v989, 1
      %vm1006 = vcmp.ge.s32.totalorder %v990, 1
      %vm1007 = vcmp.ge.s32.totalorder %v991, 1
      %vm1008 = vcmp.ge.s32.totalorder %v992, 1
      %vm1009 = vcmp.ge.s32.totalorder %v993, 1
      %vm1010 = vcmp.ge.s32.totalorder %v994, 1
      %v1011 = vsel %vm995, 1, 0
      %v1012 = vsel %vm996, 1, 0
      %v1013 = vsel %vm997, 1, 0
      %v1014 = vsel %vm998, 1, 0
      %v1015 = vsel %vm999, 1, 0
      %v1016 = vsel %vm1000, 1, 0
      %v1017 = vsel %vm1001, 1, 0
      %v1018 = vsel %vm1002, 1, 0
      %v1019 = vsel %vm1003, 1, 0
      %v1020 = vsel %vm1004, 1, 0
      %v1021 = vsel %vm1005, 1, 0
      %v1022 = vsel %vm1006, 1, 0
      %v1023 = vsel %vm1007, 1, 0
      %v1024 = vsel %vm1008, 1, 0
      %v1025 = vsel %vm1009, 1, 0
      %v1026 = vsel %vm1010, 1, 0
      %v1027 = vcvt.s32.f32 %v1011
      %v1028 = vcvt.s32.f32 %v1012
      %v1029 = vcvt.s32.f32 %v1013
      %v1030 = vcvt.s32.f32 %v1014
      %v1031 = vcvt.s32.f32 %v1015
      %v1032 = vcvt.s32.f32 %v1016
      %v1033 = vcvt.s32.f32 %v1017
      %v1034 = vcvt.s32.f32 %v1018
      %v1035 = vcvt.s32.f32 %v1019
      %v1036 = vcvt.s32.f32 %v1020
      %v1037 = vcvt.s32.f32 %v1021
      %v1038 = vcvt.s32.f32 %v1022
      %v1039 = vcvt.s32.f32 %v1023
      %v1040 = vcvt.s32.f32 %v1024
      %v1041 = vcvt.s32.f32 %v1025
      %v1042 = vcvt.s32.f32 %v1026
      %vm1043 = vcmp.le.s32.totalorder %v979, 14
      %vm1044 = vcmp.le.s32.totalorder %v980, 14
      %vm1045 = vcmp.le.s32.totalorder %v981, 14
      %vm1046 = vcmp.le.s32.totalorder %v982, 14
      %vm1047 = vcmp.le.s32.totalorder %v983, 14
      %vm1048 = vcmp.le.s32.totalorder %v984, 14
      %vm1049 = vcmp.le.s32.totalorder %v985, 14
      %vm1050 = vcmp.le.s32.totalorder %v986, 14
      %vm1051 = vcmp.le.s32.totalorder %v987, 14
      %vm1052 = vcmp.le.s32.totalorder %v988, 14
      %vm1053 = vcmp.le.s32.totalorder %v989, 14
      %vm1054 = vcmp.le.s32.totalorder %v990, 14
      %vm1055 = vcmp.le.s32.totalorder %v991, 14
      %vm1056 = vcmp.le.s32.totalorder %v992, 14
      %vm1057 = vcmp.le.s32.totalorder %v993, 14
      %vm1058 = vcmp.le.s32.totalorder %v994, 14
      %v1059 = vsel %vm1043, 1, 0
      %v1060 = vsel %vm1044, 1, 0
      %v1061 = vsel %vm1045, 1, 0
      %v1062 = vsel %vm1046, 1, 0
      %v1063 = vsel %vm1047, 1, 0
      %v1064 = vsel %vm1048, 1, 0
      %v1065 = vsel %vm1049, 1, 0
      %v1066 = vsel %vm1050, 1, 0
      %v1067 = vsel %vm1051, 1, 0
      %v1068 = vsel %vm1052, 1, 0
      %v1069 = vsel %vm1053, 1, 0
      %v1070 = vsel %vm1054, 1, 0
      %v1071 = vsel %vm1055, 1, 0
      %v1072 = vsel %vm1056, 1, 0
      %v1073 = vsel %vm1057, 1, 0
      %v1074 = vsel %vm1058, 1, 0
      %v1075 = vcvt.s32.f32 %v1059
      %v1076 = vcvt.s32.f32 %v1060
      %v1077 = vcvt.s32.f32 %v1061
      %v1078 = vcvt.s32.f32 %v1062
      %v1079 = vcvt.s32.f32 %v1063
      %v1080 = vcvt.s32.f32 %v1064
      %v1081 = vcvt.s32.f32 %v1065
      %v1082 = vcvt.s32.f32 %v1066
      %v1083 = vcvt.s32.f32 %v1067
      %v1084 = vcvt.s32.f32 %v1068
      %v1085 = vcvt.s32.f32 %v1069
      %v1086 = vcvt.s32.f32 %v1070
      %v1087 = vcvt.s32.f32 %v1071
      %v1088 = vcvt.s32.f32 %v1072
      %v1089 = vcvt.s32.f32 %v1073
      %v1090 = vcvt.s32.f32 %v1074
      %v1091 = vld [vmem:[%s6 + $0x1] sm:$0x1]
      %v1092 = vperm.slane %v1091, 0
      %v1093 = vmul.f32 %v1092, %v655
      %v1094 = vmul.f32 %v1092, %v656
      %v1095 = vmul.f32 %v1092, %v657
      %v1096 = vmul.f32 %v1092, %v658
      %v1097 = vmul.f32 %v1092, %v659
      %v1098 = vmul.f32 %v1092, %v660
      %v1099 = vmul.f32 %v1092, %v661
      %v1100 = vmul.f32 %v1092, %v662
      %v1101 = vmul.f32 %v1092, %v663
      %v1102 = vmul.f32 %v1092, %v664
      %v1103 = vmul.f32 %v1092, %v665
      %v1104 = vmul.f32 %v1092, %v666
      %v1105 = vmul.f32 %v1092, %v667
      %v1106 = vmul.f32 %v1092, %v668
      %v1107 = vmul.f32 %v1092, %v669
      %v1108 = vmul.f32 %v1092, %v670
      %v1109 = vld [vmem:[%s6] sm:$0x1]
      %v1110 = vmul.f32 %v739, %v653
      %v1111 = vmul.f32 %v740, %v654
      %v1112 = vmul.f32 %v741, %v655
      %v1113 = vmul.f32 %v742, %v656
      %v1114 = vmul.f32 %v743, %v657
      %v1115 = vmul.f32 %v744, %v658
      %v1116 = vmul.f32 %v745, %v659
      %v1117 = vmul.f32 %v746, %v660
      %v1118 = vmul.f32 %v747, %v661
      %v1119 = vmul.f32 %v748, %v662
      %v1120 = vmul.f32 %v749, %v663
      %v1121 = vmul.f32 %v750, %v664
      %v1122 = vmul.f32 %v751, %v665
      %v1123 = vmul.f32 %v752, %v666
      %v1124 = vmul.f32 %v753, %v667
      %v1125 = vmul.f32 %v754, %v668
      %v1126 = vperm.slane %v1109, 0
      %v1127 = vmul.f32 %v1126, %v1110
      %v1128 = vmul.f32 %v1126, %v1111
      %v1129 = vmul.f32 %v1126, %v1112
      %v1130 = vmul.f32 %v1126, %v1113
      %v1131 = vmul.f32 %v1126, %v1114
      %v1132 = vmul.f32 %v1126, %v1115
      %v1133 = vmul.f32 %v1126, %v1116
      %v1134 = vmul.f32 %v1126, %v1117
      %v1135 = vmul.f32 %v1126, %v1118
      %v1136 = vmul.f32 %v1126, %v1119
      %v1137 = vmul.f32 %v1126, %v1120
      %v1138 = vmul.f32 %v1126, %v1121
      %v1139 = vmul.f32 %v1126, %v1122
      %v1140 = vmul.f32 %v1126, %v1123
      %v1141 = vmul.f32 %v1126, %v1124
      %v1142 = vmul.f32 %v1126, %v1125
      %v1143 = vadd.f32 %v1093, %v1127
      %v1144 = vadd.f32 %v1094, %v1128
      %v1145 = vadd.f32 %v1095, %v1129
      %v1146 = vadd.f32 %v1096, %v1130
      %v1147 = vadd.f32 %v1097, %v1131
      %v1148 = vadd.f32 %v1098, %v1132
      %v1149 = vadd.f32 %v1099, %v1133
      %v1150 = vadd.f32 %v1100, %v1134
      %v1151 = vadd.f32 %v1101, %v1135
      %v1152 = vadd.f32 %v1102, %v1136
      %v1153 = vadd.f32 %v1103, %v1137
      %v1154 = vadd.f32 %v1104, %v1138
      %v1155 = vadd.f32 %v1105, %v1139
      %v1156 = vadd.f32 %v1106, %v1140
      %v1157 = vadd.f32 %v1107, %v1141
      %v1158 = vadd.f32 %v1108, %v1142
      %v1159 = vld [vmem:[%s6 + $0x2] sm:$0x1]
      %v1160 = vmul.f32 %v787, %v657
      %v1161 = vmul.f32 %v788, %v658
      %v1162 = vmul.f32 %v789, %v659
      %v1163 = vmul.f32 %v790, %v660
      %v1164 = vmul.f32 %v791, %v661
      %v1165 = vmul.f32 %v792, %v662
      %v1166 = vmul.f32 %v793, %v663
      %v1167 = vmul.f32 %v794, %v664
      %v1168 = vmul.f32 %v795, %v665
      %v1169 = vmul.f32 %v796, %v666
      %v1170 = vmul.f32 %v797, %v667
      %v1171 = vmul.f32 %v798, %v668
      %v1172 = vmul.f32 %v799, %v669
      %v1173 = vmul.f32 %v800, %v670
      %v1174 = vmul.f32 %v801, %v671
      %v1175 = vmul.f32 %v802, %v672
      %v1176 = vperm.slane %v1159, 0
      %v1177 = vmul.f32 %v1176, %v1160
      %v1178 = vmul.f32 %v1176, %v1161
      %v1179 = vmul.f32 %v1176, %v1162
      %v1180 = vmul.f32 %v1176, %v1163
      %v1181 = vmul.f32 %v1176, %v1164
      %v1182 = vmul.f32 %v1176, %v1165
      %v1183 = vmul.f32 %v1176, %v1166
      %v1184 = vmul.f32 %v1176, %v1167
      %v1185 = vmul.f32 %v1176, %v1168
      %v1186 = vmul.f32 %v1176, %v1169
      %v1187 = vmul.f32 %v1176, %v1170
      %v1188 = vmul.f32 %v1176, %v1171
      %v1189 = vmul.f32 %v1176, %v1172
      %v1190 = vmul.f32 %v1176, %v1173
      %v1191 = vmul.f32 %v1176, %v1174
      %v1192 = vmul.f32 %v1176, %v1175
      %v1193 = vadd.f32 %v1143, %v1177
      %v1194 = vadd.f32 %v1144, %v1178
      %v1195 = vadd.f32 %v1145, %v1179
      %v1196 = vadd.f32 %v1146, %v1180
      %v1197 = vadd.f32 %v1147, %v1181
      %v1198 = vadd.f32 %v1148, %v1182
      %v1199 = vadd.f32 %v1149, %v1183
      %v1200 = vadd.f32 %v1150, %v1184
      %v1201 = vadd.f32 %v1151, %v1185
      %v1202 = vadd.f32 %v1152, %v1186
      %v1203 = vadd.f32 %v1153, %v1187
      %v1204 = vadd.f32 %v1154, %v1188
      %v1205 = vadd.f32 %v1155, %v1189
      %v1206 = vadd.f32 %v1156, %v1190
      %v1207 = vadd.f32 %v1157, %v1191
      %v1208 = vadd.f32 %v1158, %v1192
      %vm1225 = vcmask 1040384
      %v1226 = vrot.slane %v1193, 7
      %v1227 = vrot.slane %v1194, 7
      %v1228 = vsel %vm1225, %v1226, %v1227
      %v1229 = vrot.slane %v1195, 7
      %v1230 = vsel %vm1225, %v1227, %v1229
      %v1231 = vrot.slane %v1196, 7
      %v1232 = vsel %vm1225, %v1229, %v1231
      %v1233 = vrot.slane %v1197, 7
      %v1234 = vsel %vm1225, %v1231, %v1233
      %v1235 = vrot.slane %v1198, 7
      %v1236 = vsel %vm1225, %v1233, %v1235
      %v1237 = vrot.slane %v1199, 7
      %v1238 = vsel %vm1225, %v1235, %v1237
      %v1239 = vrot.slane %v1200, 7
      %v1240 = vsel %vm1225, %v1237, %v1239
      %v1241 = vrot.slane %v1201, 7
      %v1242 = vsel %vm1225, %v1239, %v1241
      %v1243 = vrot.slane %v1202, 7
      %v1244 = vsel %vm1225, %v1241, %v1243
      %v1245 = vrot.slane %v1203, 7
      %v1246 = vsel %vm1225, %v1243, %v1245
      %v1247 = vrot.slane %v1204, 7
      %v1248 = vsel %vm1225, %v1245, %v1247
      %v1249 = vrot.slane %v1205, 7
      %v1250 = vsel %vm1225, %v1247, %v1249
      %v1251 = vrot.slane %v1206, 7
      %v1252 = vsel %vm1225, %v1249, %v1251
      %v1253 = vrot.slane %v1207, 7
      %v1254 = vsel %vm1225, %v1251, %v1253
      %v1255 = vrot.slane %v1208, 7
      %v1256 = vsel %vm1225, %v1253, %v1255
      %v1273 = vsel %vm1225, 0.0, %v1226
      %vm1274 = vcmask 1046528
      %v1275 = vrot.slane %v1193, 1
      %v1276 = vrot.slane %v1194, 1
      %v1277 = vsel %vm1274, %v1275, %v1276
      %v1278 = vrot.slane %v1195, 1
      %v1279 = vsel %vm1274, %v1276, %v1278
      %v1280 = vrot.slane %v1196, 1
      %v1281 = vsel %vm1274, %v1278, %v1280
      %v1282 = vrot.slane %v1197, 1
      %v1283 = vsel %vm1274, %v1280, %v1282
      %v1284 = vrot.slane %v1198, 1
      %v1285 = vsel %vm1274, %v1282, %v1284
      %v1286 = vrot.slane %v1199, 1
      %v1287 = vsel %vm1274, %v1284, %v1286
      %v1288 = vrot.slane %v1200, 1
      %v1289 = vsel %vm1274, %v1286, %v1288
      %v1290 = vrot.slane %v1201, 1
      %v1291 = vsel %vm1274, %v1288, %v1290
      %v1292 = vrot.slane %v1202, 1
      %v1293 = vsel %vm1274, %v1290, %v1292
      %v1294 = vrot.slane %v1203, 1
      %v1295 = vsel %vm1274, %v1292, %v1294
      %v1296 = vrot.slane %v1204, 1
      %v1297 = vsel %vm1274, %v1294, %v1296
      %v1298 = vrot.slane %v1205, 1
      %v1299 = vsel %vm1274, %v1296, %v1298
      %v1300 = vrot.slane %v1206, 1
      %v1301 = vsel %vm1274, %v1298, %v1300
      %v1302 = vrot.slane %v1207, 1
      %v1303 = vsel %vm1274, %v1300, %v1302
      %v1304 = vrot.slane %v1208, 1
      %v1305 = vsel %vm1274, %v1302, %v1304
      %v1322 = vsel %vm1274, %v1304, 0.0
      %v1323 = vld [vmem:[%s7 + $0x1] sm:$0x1]
      %v1324 = vperm.slane %v1323, 0
      %v1325 = vmul.f32 %v1324, %v1193
      %v1326 = vmul.f32 %v1324, %v1194
      %v1327 = vmul.f32 %v1324, %v1195
      %v1328 = vmul.f32 %v1324, %v1196
      %v1329 = vmul.f32 %v1324, %v1197
      %v1330 = vmul.f32 %v1324, %v1198
      %v1331 = vmul.f32 %v1324, %v1199
      %v1332 = vmul.f32 %v1324, %v1200
      %v1333 = vmul.f32 %v1324, %v1201
      %v1334 = vmul.f32 %v1324, %v1202
      %v1335 = vmul.f32 %v1324, %v1203
      %v1336 = vmul.f32 %v1324, %v1204
      %v1337 = vmul.f32 %v1324, %v1205
      %v1338 = vmul.f32 %v1324, %v1206
      %v1339 = vmul.f32 %v1324, %v1207
      %v1340 = vmul.f32 %v1324, %v1208
      %v1341 = vld [vmem:[%s7] sm:$0x1]
      %v1342 = vmul.f32 %v1027, %v1273
      %v1343 = vmul.f32 %v1028, %v1228
      %v1344 = vmul.f32 %v1029, %v1230
      %v1345 = vmul.f32 %v1030, %v1232
      %v1346 = vmul.f32 %v1031, %v1234
      %v1347 = vmul.f32 %v1032, %v1236
      %v1348 = vmul.f32 %v1033, %v1238
      %v1349 = vmul.f32 %v1034, %v1240
      %v1350 = vmul.f32 %v1035, %v1242
      %v1351 = vmul.f32 %v1036, %v1244
      %v1352 = vmul.f32 %v1037, %v1246
      %v1353 = vmul.f32 %v1038, %v1248
      %v1354 = vmul.f32 %v1039, %v1250
      %v1355 = vmul.f32 %v1040, %v1252
      %v1356 = vmul.f32 %v1041, %v1254
      %v1357 = vmul.f32 %v1042, %v1256
      %v1358 = vperm.slane %v1341, 0
      %v1359 = vmul.f32 %v1358, %v1342
      %v1360 = vmul.f32 %v1358, %v1343
      %v1361 = vmul.f32 %v1358, %v1344
      %v1362 = vmul.f32 %v1358, %v1345
      %v1363 = vmul.f32 %v1358, %v1346
      %v1364 = vmul.f32 %v1358, %v1347
      %v1365 = vmul.f32 %v1358, %v1348
      %v1366 = vmul.f32 %v1358, %v1349
      %v1367 = vmul.f32 %v1358, %v1350
      %v1368 = vmul.f32 %v1358, %v1351
      %v1369 = vmul.f32 %v1358, %v1352
      %v1370 = vmul.f32 %v1358, %v1353
      %v1371 = vmul.f32 %v1358, %v1354
      %v1372 = vmul.f32 %v1358, %v1355
      %v1373 = vmul.f32 %v1358, %v1356
      %v1374 = vmul.f32 %v1358, %v1357
      %v1375 = vadd.f32 %v1325, %v1359
      %v1376 = vadd.f32 %v1326, %v1360
      %v1377 = vadd.f32 %v1327, %v1361
      %v1378 = vadd.f32 %v1328, %v1362
      %v1379 = vadd.f32 %v1329, %v1363
      %v1380 = vadd.f32 %v1330, %v1364
      %v1381 = vadd.f32 %v1331, %v1365
      %v1382 = vadd.f32 %v1332, %v1366
      %v1383 = vadd.f32 %v1333, %v1367
      %v1384 = vadd.f32 %v1334, %v1368
      %v1385 = vadd.f32 %v1335, %v1369
      %v1386 = vadd.f32 %v1336, %v1370
      %v1387 = vadd.f32 %v1337, %v1371
      %v1388 = vadd.f32 %v1338, %v1372
      %v1389 = vadd.f32 %v1339, %v1373
      %v1390 = vadd.f32 %v1340, %v1374
      %v1391 = vld [vmem:[%s7 + $0x2] sm:$0x1]
      %v1392 = vmul.f32 %v1075, %v1277
      %v1393 = vmul.f32 %v1076, %v1279
      %v1394 = vmul.f32 %v1077, %v1281
      %v1395 = vmul.f32 %v1078, %v1283
      %v1396 = vmul.f32 %v1079, %v1285
      %v1397 = vmul.f32 %v1080, %v1287
      %v1398 = vmul.f32 %v1081, %v1289
      %v1399 = vmul.f32 %v1082, %v1291
      %v1400 = vmul.f32 %v1083, %v1293
      %v1401 = vmul.f32 %v1084, %v1295
      %v1402 = vmul.f32 %v1085, %v1297
      %v1403 = vmul.f32 %v1086, %v1299
      %v1404 = vmul.f32 %v1087, %v1301
      %v1405 = vmul.f32 %v1088, %v1303
      %v1406 = vmul.f32 %v1089, %v1305
      %v1407 = vmul.f32 %v1090, %v1322
      %v1408 = vperm.slane %v1391, 0
      %v1409 = vmul.f32 %v1408, %v1392
      %v1410 = vmul.f32 %v1408, %v1393
      %v1411 = vmul.f32 %v1408, %v1394
      %v1412 = vmul.f32 %v1408, %v1395
      %v1413 = vmul.f32 %v1408, %v1396
      %v1414 = vmul.f32 %v1408, %v1397
      %v1415 = vmul.f32 %v1408, %v1398
      %v1416 = vmul.f32 %v1408, %v1399
      %v1417 = vmul.f32 %v1408, %v1400
      %v1418 = vmul.f32 %v1408, %v1401
      %v1419 = vmul.f32 %v1408, %v1402
      %v1420 = vmul.f32 %v1408, %v1403
      %v1421 = vmul.f32 %v1408, %v1404
      %v1422 = vmul.f32 %v1408, %v1405
      %v1423 = vmul.f32 %v1408, %v1406
      %v1424 = vmul.f32 %v1408, %v1407
      %v1425 = vadd.f32 %v1375, %v1409
      %v1426 = vadd.f32 %v1376, %v1410
      %v1427 = vadd.f32 %v1377, %v1411
      %v1428 = vadd.f32 %v1378, %v1412
      %v1429 = vadd.f32 %v1379, %v1413
      %v1430 = vadd.f32 %v1380, %v1414
      %v1431 = vadd.f32 %v1381, %v1415
      %v1432 = vadd.f32 %v1382, %v1416
      %v1433 = vadd.f32 %v1383, %v1417
      %v1434 = vadd.f32 %v1384, %v1418
      %v1435 = vadd.f32 %v1385, %v1419
      %v1436 = vadd.f32 %v1386, %v1420
      %v1437 = vadd.f32 %v1387, %v1421
      %v1438 = vadd.f32 %v1388, %v1422
      %v1439 = vadd.f32 %v1389, %v1423
      %v1440 = vadd.f32 %v1390, %v1424
      %v1441 = vpack.c.bf16 %v1426, %v1425
      %v1442 = vpack.c.bf16 %v1428, %v1427
      %v1443 = vpack.c.bf16 %v1430, %v1429
      %v1444 = vpack.c.bf16 %v1432, %v1431
      %v1445 = vpack.c.bf16 %v1434, %v1433
      %v1446 = vpack.c.bf16 %v1436, %v1435
      %v1447 = vpack.c.bf16 %v1438, %v1437
      %v1448 = vpack.c.bf16 %v1440, %v1439
      %v1449 = vld [vmem:[%s8] sm:$0xf]
      %v1450 = vld [vmem:[%s8 + $0x4] sm:$0xf]
      %v1451 = vld [vmem:[%s8 + $0x8] sm:$0xf]
      %v1452 = vld [vmem:[%s8 + $0xc] sm:$0xf]
      %v1453 = vld [vmem:[%s8 + $0x10] sm:$0xf]
      %v1454 = vld [vmem:[%s8 + $0x14] sm:$0xf]
      %v1455 = vld [vmem:[%s8 + $0x18] sm:$0xf]
      %v1456 = vld [vmem:[%s8 + $0x1c] sm:$0xf]
      %v1457 = vld [vmem:[%s8 + $0x20] sm:$0xf]
      %v1458 = vld [vmem:[%s8 + $0x24] sm:$0xf]
      %v1459 = vld [vmem:[%s8 + $0x28] sm:$0xf]
      %v1460 = vld [vmem:[%s8 + $0x2c] sm:$0xf]
      %v1461 = vld [vmem:[%s8 + $0x30] sm:$0xf]
      %v1462 = vld [vmem:[%s8 + $0x34] sm:$0xf]
      %v1463 = vld [vmem:[%s8 + $0x38] sm:$0xf]
      %v1464 = vld [vmem:[%s8 + $0x3c] sm:$0xf]
      %v1465 = vld [vmem:[%s9] sm:$0xf]
      %v1466 = vld [vmem:[%s9 + $0x4] sm:$0xf]
      %v1483 = vunpack.c.l.b16 %v391
      %v1484 = vunpack.c.l.b16 %v392
      %v1485 = vunpack.c.l.b16 %v393
      %v1486 = vunpack.c.l.b16 %v394
      %v1487 = vunpack.c.l.b16 %v395
      %v1488 = vunpack.c.l.b16 %v396
      %v1489 = vunpack.c.l.b16 %v397
      %v1490 = vunpack.c.l.b16 %v398
      %v1491 = vunpack.c.l.b16 %v399
      %v1492 = vunpack.c.l.b16 %v400
      %v1493 = vunpack.c.l.b16 %v401
      %v1494 = vunpack.c.l.b16 %v402
      %v1495 = vunpack.c.l.b16 %v403
      %v1496 = vunpack.c.l.b16 %v404
      %v1497 = vunpack.c.l.b16 %v405
      %v1498 = vunpack.c.l.b16 %v406
      %v1499 = vpack.c.b16 %v1484, %v1483
      %v1500 = vpack.c.b16 %v1486, %v1485
      %v1501 = vpack.c.b16 %v1488, %v1487
      %v1502 = vpack.c.b16 %v1490, %v1489
      %v1503 = vpack.c.b16 %v1492, %v1491
      %v1504 = vpack.c.b16 %v1494, %v1493
      %v1505 = vpack.c.b16 %v1496, %v1495
      %v1506 = vpack.c.b16 %v1498, %v1497
      %v1509 = vunpack.c.l.b16 %v1465
      %v1510 = vunpack.c.l.b16 %v1466
      %v1511 = vpack.c.b16 %v1510, %v1509
      %v1514 = vsel %vm515, %v1499, 0
      %v1517 = vsel %vm515, %v1500, 0
      %v1520 = vsel %vm515, %v1501, 0
      %v1523 = vsel %vm515, %v1502, 0
      %v1526 = vsel %vm515, %v1503, 0
      %v1529 = vsel %vm515, %v1504, 0
      %v1532 = vsel %vm515, %v1505, 0
      %v1535 = vsel %vm515, %v1506, 0
      %1537 = vmatpush.bf16.msra.mxu0 0
      %1538 = vmatpush.bf16.msra.mxu0 0
      %1539 = vmatpush.bf16.msra.mxu0 0
      %1540 = vmatpush.bf16.msra.mxu0 0
      %1541 = vmatpush.bf16.msra.mxu0 0
      %1542 = vmatpush.bf16.msra.mxu0 0
      %1543 = vmatpush.bf16.msra.mxu0 0
      %1544 = vmatpush.bf16.msra.mxu0 %v1511
      %1545 = vmatmul.bf16.gmra.mxu0 %v1514
      %v1546 = vpop.f32.mrf.mxu0
      %v1547 = vadd.f32 0.0, %v1546
      %v1548 = vpop.f32.mrf.mxu0
      %v1549 = vadd.f32 0.0, %v1548
      %1550 = vmatmul.bf16.gmra.mxu0 %v1517
      %v1551 = vpop.f32.mrf.mxu0
      %v1552 = vadd.f32 0.0, %v1551
      %v1553 = vpop.f32.mrf.mxu0
      %v1554 = vadd.f32 0.0, %v1553
      %1555 = vmatmul.bf16.gmra.mxu0 %v1520
      %v1556 = vpop.f32.mrf.mxu0
      %v1557 = vadd.f32 0.0, %v1556
      %v1558 = vpop.f32.mrf.mxu0
      %v1559 = vadd.f32 0.0, %v1558
      %1560 = vmatmul.bf16.gmra.mxu0 %v1523
      %v1561 = vpop.f32.mrf.mxu0
      %v1562 = vadd.f32 0.0, %v1561
      %v1563 = vpop.f32.mrf.mxu0
      %v1564 = vadd.f32 0.0, %v1563
      %1565 = vmatmul.bf16.gmra.mxu0 %v1526
      %v1566 = vpop.f32.mrf.mxu0
      %v1567 = vadd.f32 0.0, %v1566
      %v1568 = vpop.f32.mrf.mxu0
      %v1569 = vadd.f32 0.0, %v1568
      %1570 = vmatmul.bf16.gmra.mxu0 %v1529
      %v1571 = vpop.f32.mrf.mxu0
      %v1572 = vadd.f32 0.0, %v1571
      %v1573 = vpop.f32.mrf.mxu0
      %v1574 = vadd.f32 0.0, %v1573
      %1575 = vmatmul.bf16.gmra.mxu0 %v1532
      %v1576 = vpop.f32.mrf.mxu0
      %v1577 = vadd.f32 0.0, %v1576
      %v1578 = vpop.f32.mrf.mxu0
      %v1579 = vadd.f32 0.0, %v1578
      %1580 = vmatmul.bf16.gmra.mxu0 %v1535
      %v1581 = vpop.f32.mrf.mxu0
      %v1582 = vadd.f32 0.0, %v1581
      %v1583 = vpop.f32.mrf.mxu0
      %v1584 = vadd.f32 0.0, %v1583
      %1585 = vdwg.mxu0
      %v1602 = vunpack.c.l.b16 %v1449
      %v1603 = vunpack.c.l.b16 %v1450
      %v1604 = vunpack.c.l.b16 %v1451
      %v1605 = vunpack.c.l.b16 %v1452
      %v1606 = vunpack.c.l.b16 %v1453
      %v1607 = vunpack.c.l.b16 %v1454
      %v1608 = vunpack.c.l.b16 %v1455
      %v1609 = vunpack.c.l.b16 %v1456
      %v1610 = vunpack.c.l.b16 %v1457
      %v1611 = vunpack.c.l.b16 %v1458
      %v1612 = vunpack.c.l.b16 %v1459
      %v1613 = vunpack.c.l.b16 %v1460
      %v1614 = vunpack.c.l.b16 %v1461
      %v1615 = vunpack.c.l.b16 %v1462
      %v1616 = vunpack.c.l.b16 %v1463
      %v1617 = vunpack.c.l.b16 %v1464
      %v1618 = vpack.c.b16 %v1603, %v1602
      %v1619 = vpack.c.b16 %v1605, %v1604
      %v1620 = vpack.c.b16 %v1607, %v1606
      %v1621 = vpack.c.b16 %v1609, %v1608
      %v1622 = vpack.c.b16 %v1611, %v1610
      %v1623 = vpack.c.b16 %v1613, %v1612
      %v1624 = vpack.c.b16 %v1615, %v1614
      %v1625 = vpack.c.b16 %v1617, %v1616
      %1634 = vmatpush.bf16.msra.mxu0 %v1625
      %1635 = vmatpush.bf16.msra.mxu0 %v1624
      %1636 = vmatpush.bf16.msra.mxu0 %v1623
      %1637 = vmatpush.bf16.msra.mxu0 %v1622
      %1638 = vmatpush.bf16.msra.mxu0 %v1621
      %1639 = vmatpush.bf16.msra.mxu0 %v1620
      %1640 = vmatpush.bf16.msra.mxu0 %v1619
      %1641 = vmatpush.bf16.msra.mxu0 %v1618
      %1642 = vmatmul.bf16.gmra.mxu0 %v1441
      %v1643 = vpop.f32.mrf.mxu0
      %v1644 = vadd.f32 %v1547, %v1643
      %v1645 = vpop.f32.mrf.mxu0
      %v1646 = vadd.f32 %v1549, %v1645
      %1647 = vmatmul.bf16.gmra.mxu0 %v1442
      %v1648 = vpop.f32.mrf.mxu0
      %v1649 = vadd.f32 %v1552, %v1648
      %v1650 = vpop.f32.mrf.mxu0
      %v1651 = vadd.f32 %v1554, %v1650
      %1652 = vmatmul.bf16.gmra.mxu0 %v1443
      %v1653 = vpop.f32.mrf.mxu0
      %v1654 = vadd.f32 %v1557, %v1653
      %v1655 = vpop.f32.mrf.mxu0
      %v1656 = vadd.f32 %v1559, %v1655
      %1657 = vmatmul.bf16.gmra.mxu0 %v1444
      %v1658 = vpop.f32.mrf.mxu0
      %v1659 = vadd.f32 %v1562, %v1658
      %v1660 = vpop.f32.mrf.mxu0
      %v1661 = vadd.f32 %v1564, %v1660
      %1662 = vmatmul.bf16.gmra.mxu0 %v1445
      %v1663 = vpop.f32.mrf.mxu0
      %v1664 = vadd.f32 %v1567, %v1663
      %v1665 = vpop.f32.mrf.mxu0
      %v1666 = vadd.f32 %v1569, %v1665
      %1667 = vmatmul.bf16.gmra.mxu0 %v1446
      %v1668 = vpop.f32.mrf.mxu0
      %v1669 = vadd.f32 %v1572, %v1668
      %v1670 = vpop.f32.mrf.mxu0
      %v1671 = vadd.f32 %v1574, %v1670
      %1672 = vmatmul.bf16.gmra.mxu0 %v1447
      %v1673 = vpop.f32.mrf.mxu0
      %v1674 = vadd.f32 %v1577, %v1673
      %v1675 = vpop.f32.mrf.mxu0
      %v1676 = vadd.f32 %v1579, %v1675
      %1677 = vmatmul.bf16.gmra.mxu0 %v1448
      %v1678 = vpop.f32.mrf.mxu0
      %v1679 = vadd.f32 %v1582, %v1678
      %v1680 = vpop.f32.mrf.mxu0
      %v1681 = vadd.f32 %v1584, %v1680
      %1682 = vdwg.mxu0
      %vm1683 = vcmask 64512
      %1684 = vst.msk [vmem:[%s381] sm:$0xff] %vm1683, %v1644
      %1685 = vst.msk [vmem:[%s381 + $0x8] sm:$0xff] %vm1683, %v1646
      %1686 = vst.msk [vmem:[%s381 + $0x10] sm:$0xff] %vm1683, %v1649
      %1687 = vst.msk [vmem:[%s381 + $0x18] sm:$0xff] %vm1683, %v1651
      %1688 = vst.msk [vmem:[%s381 + $0x20] sm:$0xff] %vm1683, %v1654
      %1689 = vst.msk [vmem:[%s381 + $0x28] sm:$0xff] %vm1683, %v1656
      %1690 = vst.msk [vmem:[%s381 + $0x30] sm:$0xff] %vm1683, %v1659
      %1691 = vst.msk [vmem:[%s381 + $0x38] sm:$0xff] %vm1683, %v1661
      %1692 = vst.msk [vmem:[%s381 + $0x40] sm:$0xff] %vm1683, %v1664
      %1693 = vst.msk [vmem:[%s381 + $0x48] sm:$0xff] %vm1683, %v1666
      %1694 = vst.msk [vmem:[%s381 + $0x50] sm:$0xff] %vm1683, %v1669
      %1695 = vst.msk [vmem:[%s381 + $0x58] sm:$0xff] %vm1683, %v1671
      %1696 = vst.msk [vmem:[%s381 + $0x60] sm:$0xff] %vm1683, %v1674
      %1697 = vst.msk [vmem:[%s381 + $0x68] sm:$0xff] %vm1683, %v1676
      %1698 = vst.msk [vmem:[%s381 + $0x70] sm:$0xff] %vm1683, %v1679
      %1699 = vst.msk [vmem:[%s381 + $0x78] sm:$0xff] %vm1683, %v1681
      %s1700 = smul.u32 16, %s26
      %p1701 = scmp.lt.s32.totalorder %s25, 1
      %s1702 = scalar_select %p1701, %s25, 1
      %p1703 = scmp.lt.s32.totalorder %s1700, 31
      %s1704 = scalar_select %p1703, %s1700, 31
      %s1705 = smul.addr %s1702, 32
      %s1706 = sadd.s32 %s1704, %s1705
      %s1707 = smul.addr %s1706, 8
      %s1708 = scalar_lea.vmem %s10, %s1707
      // Predicated region
      $region61: #{basic_block_forward.1} parent=59 // pred_check
        %p1709 = pneg %p268
      $region62: #{basic_block_forward.1} parent=59 // pred_check_branch
        %1711 = sbr.rel (%p1709) target = $region64
      $region63: #{basic_block_forward.1} parent=59 // pred_region
        %s1712 = smul.u32 16, %s26
      $region64: #{basic_block_forward.1} parent=59 // pred_fallthru
        _
    $region60: #{basic_block_forward.1} parent=5 // pred_fallthru
      _
    %p1713 = scmp.le.s32.totalorder 2, %s16
    // Predicated region
    $region65: #{basic_block_forward.1} parent=5 // pred_check
      %p1714 = pneg %p1713
    $region66: #{basic_block_forward.1} parent=5 // pred_check_branch
      %1716 = sbr.rel (%p1714) target = $region68
    $region67: #{basic_block_forward.1} parent=5 // pred_region
      %s1717 = ssub.s32 %s16, 2
      // Predicated region
      $region69: #{basic_block_forward.1} parent=67 // pred_check
        %p1718 = pneg %p274
      $region70: #{basic_block_forward.1} parent=67 // pred_check_branch
        %1720 = sbr.rel (%p1718) target = $region72
      $region71: #{basic_block_forward.1} parent=67 // pred_region
        %s1721 = smul.u32 16, %s28
        %p1722 = scmp.lt.s32.totalorder %s27, 1
        %s1723 = scalar_select %p1722, %s27, 1
        %p1724 = scmp.lt.s32.totalorder %s1721, 31
        %s1725 = scalar_select %p1724, %s1721, 31
        %s1726 = smul.addr %s1723, 32
        %s1727 = sadd.s32 %s1725, %s1726
        %s1728 = smul.addr %s1727, 8
        %s1729 = scalar_lea.vmem %s10, %s1728
      $region72: #{basic_block_forward.1} parent=67 // pred_fallthru
        _
    $region68: #{basic_block_forward.1} parent=5 // pred_fallthru
      _
  $region6: #{basic_block_forward.1} parent=0 // loop_footer
    %s20 = sadd.s32 1, %s16
  $region7: #{basic_block_forward.1} parent=0 // loop_footer_branch
    %15 = sbr.rel target = $region3
  $region8: #{basic_block_forward.1} parent=0 // loop_exit
    _

</llo_original>
